<compile_context>
chip_gen: v6e
topology: v6e:2x2x1
jax: 0.10.0
libtpu: 0.0.40
codegen_flags: <defaults>
</compile_context>

<pallas_src>
import numpy as np
import jax
import jax.numpy as jnp
from jax.experimental import pallas as pl
from jax.experimental.pallas import tpu as pltpu

# ---- module configuration (mirrors SDFModelMulti.__init__) ------------------
NUM_LAYERS = 8            # num_layers
SKIP = True               # not no_skip_connections
PE = 2                    # positional_encoding_embeddings
LATENT = 16               # latent_size
INNER = 64                # inner_dim (small for the synthetic test)
OUT_DIM = 1               # output_dim

DIM_COORDS = 3 if PE == 0 else 3 + 6 * PE        # 15
D_IN = LATENT + DIM_COORDS                       # 31 (= skip_tensor_dim)
D_IN_PAD = ((D_IN + 7) // 8) * 8                 # 32, zero-padded input width
SKIP_OUT = INNER - D_IN                          # 33 = skip_layer output width
NUM_EXTRA = 2 if (SKIP and NUM_LAYERS >= 8) else 1
NUM_NET_LAYERS = NUM_LAYERS - NUM_EXTRA          # 6 weight-norm Linear+ReLU layers

MAX_TILE_B = 2048         # default batch tile (fits easily even in v7x's 64 MiB VMEM)


# ---- Pallas kernel: the whole MLP hot path ----------------------------------
def _sdf_kernel(x_ref,
                w0, b0, w1, b1, w2, b2,          # net[0..2]  (weight-normed)
                ws, bs,                          # skip_layer
                w3a, w3b, b3,                    # net[3] split for skip concat
                w4, b4, w5, b5,                  # net[4..5]
                wf, bf,                          # final_layer (row vector + scalar)
                o_ref):
    f32 = jnp.float32
    b16 = jnp.bfloat16

    x = x_ref[...]                               # (TILE_B, 32) bf16

    def wn_layer(h, w, b):
        acc = jnp.dot(h, w[...], preferred_element_type=f32) + b[...]
        return jnp.maximum(acc, 0.0).astype(b16)

    h = wn_layer(x, w0, b0)
    h = wn_layer(h, w1, b1)
    h = wn_layer(h, w2, b2)

    # skip layer + skip connection:
    #   hstack((s, x)) @ W3 == s @ W3[:SKIP_OUT] + x @ W3[SKIP_OUT:]
    s = wn_layer(h, ws, bs)                      # (TILE_B, SKIP_OUT)
    acc = (jnp.dot(s, w3a[...], preferred_element_type=f32)
           + jnp.dot(x, w3b[...], preferred_element_type=f32)
           + b3[...])
    h = jnp.maximum(acc, 0.0).astype(b16)

    h = wn_layer(h, w4, b4)
    h = wn_layer(h, w5, b5)

    # final Linear(INNER, 1) + Tanh as a VPU multiply + lane reduce (XLU) and
    # EUP tanh; store lane-dense: batch maps to lanes of a (1, TILE_B) row.
    hf = h.astype(f32)
    row = jnp.sum(hf * wf[...], axis=-1).reshape(1, -1)    # (1, TILE_B)
    o_ref[...] = jnp.tanh(row + bf[...])                   # bf is (1, 1)


def sdf_forward_pallas(x_pe, params, max_tile_b=MAX_TILE_B):
    """x_pe: (B, D_IN) positionally-encoded input (f32). Returns (B, 1) f32."""
    B = x_pe.shape[0]
    # lane-friendly batch tile (multiple of 128), capped by max_tile_b
    tile_b = min(((max_tile_b + 127) // 128) * 128, ((B + 127) // 128) * 128)
    n_tiles = (B + tile_b - 1) // tile_b
    b_pad = n_tiles * tile_b

    # zero-pad batch and feature dims, cast activations to bf16 for the MXU
    x = jnp.zeros((b_pad, D_IN_PAD), jnp.float32).at[:B, :D_IN].set(x_pe)
    x = x.astype(jnp.bfloat16)

    weight_args = (
        params["w0"], params["b0"], params["w1"], params["b1"],
        params["w2"], params["b2"],
        params["ws"], params["bs"],
        params["w3a"], params["w3b"], params["b3"],
        params["w4"], params["b4"], params["w5"], params["b5"],
        params["wf"], params["bf"],
    )
    # weights/biases: full-array blocks with a constant index_map -> DMA'd into
    # VMEM once and kept resident across all grid steps.
    weight_specs = [pl.BlockSpec(a.shape, lambda i: (0, 0)) for a in weight_args]

    out = pl.pallas_call(
        _sdf_kernel,
        out_shape=jax.ShapeDtypeStruct((1, b_pad), jnp.float32),
        grid=(n_tiles,),
        in_specs=[pl.BlockSpec((tile_b, D_IN_PAD), lambda i: (i, 0))] + weight_specs,
        out_specs=pl.BlockSpec((1, tile_b), lambda i: (0, i)),
        compiler_params=pltpu.CompilerParams(
            dimension_semantics=("parallel",),
        ),
    )(x, *weight_args)

    return out[0, :B].reshape(B, OUT_DIM)


# ---- glue: positional encoding (elementwise, done in plain JAX) --------------
def positional_encoding(points):
    # matches SDFModelMulti.positional_encoding
    embs = [jnp.sin(np.pi * points), jnp.cos(np.pi * points)]
    for i in range(1, PE):
        embs.append(jnp.sin(np.pi * 2 * i * points))
        embs.append(jnp.cos(np.pi * 2 * i * points))
    embs.append(points)
    return jnp.concatenate(embs, axis=-1)


def preprocess(x):
    """x: (B, LATENT + 3) raw input -> (B, D_IN) as in the PyTorch forward."""
    if PE > 0:
        emb = positional_encoding(x[:, -3:])
        x = jnp.concatenate((x[:, :-3], emb), axis=-1)
    return x


# ---- deterministic parameter construction ------------------------------------
def _init_linear(key, fan_in, fan_out):
    kw, kb = jax.random.split(key)
    bound = 1.0 / np.sqrt(fan_in)
    w = jax.random.uniform(kw, (fan_out, fan_in), jnp.float32, -bound, bound)  # torch (out,in)
    b = jax.random.uniform(kb, (fan_out,), jnp.float32, -bound, bound)
    return w, b


def _weight_norm(v, g):
    # PyTorch nn.utils.weight_norm(dim=0): w = g * v / ||v||, norm per output row
    norm = jnp.sqrt(jnp.sum(v * v, axis=1, keepdims=True))
    return g[:, None] * v / norm


def make_params(key):
    b16 = jnp.bfloat16
    keys = jax.random.split(key, 16)
    ki = iter(keys)
    params = {}

    # net: 6 weight-normed Linear+ReLU layers (effective weights computed in f32)
    in_dim = D_IN
    raw = []
    for _ in range(NUM_NET_LAYERS):
        v, b = _init_linear(next(ki), in_dim, INNER)
        g = jnp.linspace(0.5, 1.5, INNER, dtype=jnp.float32)   # deterministic g
        raw.append((_weight_norm(v, g), b))                    # (INNER, in_dim)
        in_dim = INNER

    # layer 0: (in,out) layout, K padded 31 -> 32 with a zero row, bf16 weights
    w0, b0 = raw[0]
    w0p = jnp.zeros((D_IN_PAD, INNER), jnp.float32).at[:D_IN, :].set(w0.T)
    params["w0"] = w0p.astype(b16)
    params["b0"] = b0[None, :]
    for i in (1, 2, 4, 5):
        w, b = raw[i]
        params[f"w{i}"] = w.T.astype(b16)
        params[f"b{i}"] = b[None, :]

    # net[3]: split for the skip-connection concat; x-part K padded 31 -> 32
    w3, b3 = raw[3]
    w3t = w3.T                                                 # (INNER, INNER)
    params["w3a"] = w3t[:SKIP_OUT, :].astype(b16)              # (33, 64)
    w3b = jnp.zeros((D_IN_PAD, INNER), jnp.float32).at[:D_IN, :].set(w3t[SKIP_OUT:, :])
    params["w3b"] = w3b.astype(b16)                            # (32, 64)
    params["b3"] = b3[None, :]

    # skip_layer: plain Linear(INNER, SKIP_OUT) + ReLU (no weight norm)
    wsk, bsk = _init_linear(next(ki), INNER, SKIP_OUT)
    params["ws"] = wsk.T.astype(b16)                           # (64, 33)
    params["bs"] = bsk[None, :]

    # final_layer: Linear(INNER, 1) + Tanh, kept f32 for the VPU row-reduce
    wf, bf = _init_linear(next(ki), INNER, OUT_DIM)
    params["wf"] = wf.reshape(1, INNER)                        # (1, 64) f32
    params["bf"] = bf.reshape(1, 1)                            # (1, 1) f32
    return params


# ---- pure-JAX reference (mirrors the PyTorch forward, same bf16 quantization) -
def sdf_forward_ref(x_pe, params):
    f32, b16 = jnp.float32, jnp.bfloat16
    B = x_pe.shape[0]
    x = jnp.zeros((B, D_IN_PAD), f32).at[:, :D_IN].set(x_pe).astype(b16)
    relu = lambda t: jnp.maximum(t, 0.0)

    def layer(h, w, b):
        return relu(jnp.dot(h, w, preferred_element_type=f32) + b).astype(b16)

    input_data = x
    h = x
    for i in (0, 1, 2):
        h = layer(h, params[f"w{i}"], params[f"b{i}"])
    s = layer(h, params["ws"], params["bs"])
    cat = jnp.concatenate((s, input_data), axis=-1)            # torch.hstack
    w3 = jnp.concatenate((params["w3a"], params["w3b"]), axis=0)
    h = relu(jnp.dot(cat, w3, preferred_element_type=f32) + params["b3"]).astype(b16)
    for i in (4, 5):
        h = layer(h, params[f"w{i}"], params[f"b{i}"])
    hf = h.astype(f32)
    return jnp.tanh(jnp.sum(hf * params["wf"], axis=-1, keepdims=True) + params["bf"])


# TODO(synk): latent-code inference / training utilities (Adam/LBFGS loops) are
# host-side optimization code, not part of the forward pass, and are not ported.

if __name__ == "__main__":
    key = jax.random.PRNGKey(0)
    kx, kp = jax.random.split(key)

    B = 200  # small, and not a tile multiple -> exercises padding + multi-tile grid
    # raw input: (batch, latent_size + 3) = stacked [latent_code, xyz samples]
    x_raw = jax.random.normal(kx, (B, LATENT + 3), dtype=jnp.float32)
    params = make_params(kp)

    x_pe = preprocess(x_raw)                                   # (B, D_IN)
    # small tile here to exercise the batch grid; production default is 2048.
    sdf = sdf_forward_pallas(x_pe, params, max_tile_b=128)     # (B, 1)
    sdf = jax.block_until_ready(sdf)

    ref = sdf_forward_ref(x_pe, params)
    assert sdf.shape == (B, OUT_DIM)
    np.testing.assert_allclose(np.asarray(sdf), np.asarray(ref),
                               rtol=2e-3, atol=2e-3)

    print("KERNEL_OK")
</pallas_src>

<mosaic_0001>
module attributes {stable_mosaic.version = 11 : i64} {
  func.func @_sdf_kernel(%arg0: i32, %arg1: memref<128x32xbf16, #tpu.memory_space<vmem>>, %arg2: memref<32x64xbf16, #tpu.memory_space<vmem>>, %arg3: memref<1x64xf32, #tpu.memory_space<vmem>>, %arg4: memref<64x64xbf16, #tpu.memory_space<vmem>>, %arg5: memref<1x64xf32, #tpu.memory_space<vmem>>, %arg6: memref<64x64xbf16, #tpu.memory_space<vmem>>, %arg7: memref<1x64xf32, #tpu.memory_space<vmem>>, %arg8: memref<64x33xbf16, #tpu.memory_space<vmem>>, %arg9: memref<1x33xf32, #tpu.memory_space<vmem>>, %arg10: memref<33x64xbf16, #tpu.memory_space<vmem>>, %arg11: memref<32x64xbf16, #tpu.memory_space<vmem>>, %arg12: memref<1x64xf32, #tpu.memory_space<vmem>>, %arg13: memref<64x64xbf16, #tpu.memory_space<vmem>>, %arg14: memref<1x64xf32, #tpu.memory_space<vmem>>, %arg15: memref<64x64xbf16, #tpu.memory_space<vmem>>, %arg16: memref<1x64xf32, #tpu.memory_space<vmem>>, %arg17: memref<1x64xf32, #tpu.memory_space<vmem>>, %arg18: memref<1x1xf32, #tpu.memory_space<vmem>>, %arg19: memref<1x128xf32, #tpu.memory_space<vmem>>) attributes {dimension_semantics = [#tpu.dimension_semantics<parallel>], iteration_bounds = array<i64: 2>, scalar_prefetch = 0 : i64, scratch_operands = 0 : i64, tpu.core_type = #tpu.core_type<tc>, window_params = [{transform_indices = @transform_0, window_bounds = array<i64: 128, 32>}, {pipeline_mode = #tpu.pipeline_mode<synchronous>, transform_indices = @transform_1, window_bounds = array<i64: 32, 64>}, {pipeline_mode = #tpu.pipeline_mode<synchronous>, transform_indices = @transform_2, window_bounds = array<i64: 1, 64>}, {pipeline_mode = #tpu.pipeline_mode<synchronous>, transform_indices = @transform_3, window_bounds = array<i64: 64, 64>}, {pipeline_mode = #tpu.pipeline_mode<synchronous>, transform_indices = @transform_4, window_bounds = array<i64: 1, 64>}, {pipeline_mode = #tpu.pipeline_mode<synchronous>, transform_indices = @transform_5, window_bounds = array<i64: 64, 64>}, {pipeline_mode = #tpu.pipeline_mode<synchronous>, transform_indices = @transform_6, window_bounds = array<i64: 1, 64>}, {pipeline_mode = #tpu.pipeline_mode<synchronous>, transform_indices = @transform_7, window_bounds = array<i64: 64, 33>}, {pipeline_mode = #tpu.pipeline_mode<synchronous>, transform_indices = @transform_8, window_bounds = array<i64: 1, 33>}, {pipeline_mode = #tpu.pipeline_mode<synchronous>, transform_indices = @transform_9, window_bounds = array<i64: 33, 64>}, {pipeline_mode = #tpu.pipeline_mode<synchronous>, transform_indices = @transform_10, window_bounds = array<i64: 32, 64>}, {pipeline_mode = #tpu.pipeline_mode<synchronous>, transform_indices = @transform_11, window_bounds = array<i64: 1, 64>}, {pipeline_mode = #tpu.pipeline_mode<synchronous>, transform_indices = @transform_12, window_bounds = array<i64: 64, 64>}, {pipeline_mode = #tpu.pipeline_mode<synchronous>, transform_indices = @transform_13, window_bounds = array<i64: 1, 64>}, {pipeline_mode = #tpu.pipeline_mode<synchronous>, transform_indices = @transform_14, window_bounds = array<i64: 64, 64>}, {pipeline_mode = #tpu.pipeline_mode<synchronous>, transform_indices = @transform_15, window_bounds = array<i64: 1, 64>}, {pipeline_mode = #tpu.pipeline_mode<synchronous>, transform_indices = @transform_16, window_bounds = array<i64: 1, 64>}, {pipeline_mode = #tpu.pipeline_mode<synchronous>, transform_indices = @transform_17, window_bounds = array<i64: 1, 1>}, {transform_indices = @transform_18, window_bounds = array<i64: 1, 128>}]} {
    %c0 = arith.constant 0 : index
    %c0_0 = arith.constant 0 : index
    %0 = vector.load %arg1[%c0, %c0_0] : memref<128x32xbf16, #tpu.memory_space<vmem>>, vector<128x32xbf16>
    %c0_1 = arith.constant 0 : index
    %c0_2 = arith.constant 0 : index
    %1 = vector.load %arg2[%c0_1, %c0_2] : memref<32x64xbf16, #tpu.memory_space<vmem>>, vector<32x64xbf16>
    %cst = arith.constant dense<0.000000e+00> : vector<128x64xf32>
    %2 = tpu.matmul %0, %1, %cst {dimension_numbers = #tpu.dot_dimension_numbers<[1], [0], [0], [1], [0, 0, 1, 1], [], []>} : vector<128x32xbf16>, vector<32x64xbf16>, vector<128x64xf32> -> vector<128x64xf32>
    %c0_3 = arith.constant 0 : index
    %c0_4 = arith.constant 0 : index
    %3 = vector.load %arg3[%c0_3, %c0_4] : memref<1x64xf32, #tpu.memory_space<vmem>>, vector<1x64xf32>
    %4 = vector.broadcast %3 : vector<1x64xf32> to vector<128x64xf32>
    %5 = arith.addf %2, %4 : vector<128x64xf32>
    %cst_5 = arith.constant 0.000000e+00 : f32
    %6 = vector.broadcast %cst_5 : f32 to vector<128x64xf32>
    %7 = arith.maximumf %5, %6 : vector<128x64xf32>
    %8 = arith.truncf %7 : vector<128x64xf32> to vector<128x64xbf16>
    %c0_6 = arith.constant 0 : index
    %c0_7 = arith.constant 0 : index
    %9 = vector.load %arg4[%c0_6, %c0_7] : memref<64x64xbf16, #tpu.memory_space<vmem>>, vector<64x64xbf16>
    %cst_8 = arith.constant dense<0.000000e+00> : vector<128x64xf32>
    %10 = tpu.matmul %8, %9, %cst_8 {dimension_numbers = #tpu.dot_dimension_numbers<[1], [0], [0], [1], [0, 0, 1, 1], [], []>} : vector<128x64xbf16>, vector<64x64xbf16>, vector<128x64xf32> -> vector<128x64xf32>
    %c0_9 = arith.constant 0 : index
    %c0_10 = arith.constant 0 : index
    %11 = vector.load %arg5[%c0_9, %c0_10] : memref<1x64xf32, #tpu.memory_space<vmem>>, vector<1x64xf32>
    %12 = vector.broadcast %11 : vector<1x64xf32> to vector<128x64xf32>
    %13 = arith.addf %10, %12 : vector<128x64xf32>
    %cst_11 = arith.constant 0.000000e+00 : f32
    %14 = vector.broadcast %cst_11 : f32 to vector<128x64xf32>
    %15 = arith.maximumf %13, %14 : vector<128x64xf32>
    %16 = arith.truncf %15 : vector<128x64xf32> to vector<128x64xbf16>
    %c0_12 = arith.constant 0 : index
    %c0_13 = arith.constant 0 : index
    %17 = vector.load %arg6[%c0_12, %c0_13] : memref<64x64xbf16, #tpu.memory_space<vmem>>, vector<64x64xbf16>
    %cst_14 = arith.constant dense<0.000000e+00> : vector<128x64xf32>
    %18 = tpu.matmul %16, %17, %cst_14 {dimension_numbers = #tpu.dot_dimension_numbers<[1], [0], [0], [1], [0, 0, 1, 1], [], []>} : vector<128x64xbf16>, vector<64x64xbf16>, vector<128x64xf32> -> vector<128x64xf32>
    %c0_15 = arith.constant 0 : index
    %c0_16 = arith.constant 0 : index
    %19 = vector.load %arg7[%c0_15, %c0_16] : memref<1x64xf32, #tpu.memory_space<vmem>>, vector<1x64xf32>
    %20 = vector.broadcast %19 : vector<1x64xf32> to vector<128x64xf32>
    %21 = arith.addf %18, %20 : vector<128x64xf32>
    %cst_17 = arith.constant 0.000000e+00 : f32
    %22 = vector.broadcast %cst_17 : f32 to vector<128x64xf32>
    %23 = arith.maximumf %21, %22 : vector<128x64xf32>
    %24 = arith.truncf %23 : vector<128x64xf32> to vector<128x64xbf16>
    %c0_18 = arith.constant 0 : index
    %c0_19 = arith.constant 0 : index
    %25 = vector.load %arg8[%c0_18, %c0_19] : memref<64x33xbf16, #tpu.memory_space<vmem>>, vector<64x33xbf16>
    %cst_20 = arith.constant dense<0.000000e+00> : vector<128x33xf32>
    %26 = tpu.matmul %24, %25, %cst_20 {dimension_numbers = #tpu.dot_dimension_numbers<[1], [0], [0], [1], [0, 0, 1, 1], [], []>} : vector<128x64xbf16>, vector<64x33xbf16>, vector<128x33xf32> -> vector<128x33xf32>
    %c0_21 = arith.constant 0 : index
    %c0_22 = arith.constant 0 : index
    %27 = vector.load %arg9[%c0_21, %c0_22] : memref<1x33xf32, #tpu.memory_space<vmem>>, vector<1x33xf32>
    %28 = vector.broadcast %27 : vector<1x33xf32> to vector<128x33xf32>
    %29 = arith.addf %26, %28 : vector<128x33xf32>
    %cst_23 = arith.constant 0.000000e+00 : f32
    %30 = vector.broadcast %cst_23 : f32 to vector<128x33xf32>
    %31 = arith.maximumf %29, %30 : vector<128x33xf32>
    %32 = arith.truncf %31 : vector<128x33xf32> to vector<128x33xbf16>
    %c0_24 = arith.constant 0 : index
    %c0_25 = arith.constant 0 : index
    %33 = vector.load %arg10[%c0_24, %c0_25] : memref<33x64xbf16, #tpu.memory_space<vmem>>, vector<33x64xbf16>
    %cst_26 = arith.constant dense<0.000000e+00> : vector<128x64xf32>
    %34 = tpu.matmul %32, %33, %cst_26 {dimension_numbers = #tpu.dot_dimension_numbers<[1], [0], [0], [1], [0, 0, 1, 1], [], []>} : vector<128x33xbf16>, vector<33x64xbf16>, vector<128x64xf32> -> vector<128x64xf32>
    %c0_27 = arith.constant 0 : index
    %c0_28 = arith.constant 0 : index
    %35 = vector.load %arg11[%c0_27, %c0_28] : memref<32x64xbf16, #tpu.memory_space<vmem>>, vector<32x64xbf16>
    %cst_29 = arith.constant dense<0.000000e+00> : vector<128x64xf32>
    %36 = tpu.matmul %0, %35, %cst_29 {dimension_numbers = #tpu.dot_dimension_numbers<[1], [0], [0], [1], [0, 0, 1, 1], [], []>} : vector<128x32xbf16>, vector<32x64xbf16>, vector<128x64xf32> -> vector<128x64xf32>
    %37 = arith.addf %34, %36 : vector<128x64xf32>
    %c0_30 = arith.constant 0 : index
    %c0_31 = arith.constant 0 : index
    %38 = vector.load %arg12[%c0_30, %c0_31] : memref<1x64xf32, #tpu.memory_space<vmem>>, vector<1x64xf32>
    %39 = vector.broadcast %38 : vector<1x64xf32> to vector<128x64xf32>
    %40 = arith.addf %37, %39 : vector<128x64xf32>
    %cst_32 = arith.constant 0.000000e+00 : f32
    %41 = vector.broadcast %cst_32 : f32 to vector<128x64xf32>
    %42 = arith.maximumf %40, %41 : vector<128x64xf32>
    %43 = arith.truncf %42 : vector<128x64xf32> to vector<128x64xbf16>
    %c0_33 = arith.constant 0 : index
    %c0_34 = arith.constant 0 : index
    %44 = vector.load %arg13[%c0_33, %c0_34] : memref<64x64xbf16, #tpu.memory_space<vmem>>, vector<64x64xbf16>
    %cst_35 = arith.constant dense<0.000000e+00> : vector<128x64xf32>
    %45 = tpu.matmul %43, %44, %cst_35 {dimension_numbers = #tpu.dot_dimension_numbers<[1], [0], [0], [1], [0, 0, 1, 1], [], []>} : vector<128x64xbf16>, vector<64x64xbf16>, vector<128x64xf32> -> vector<128x64xf32>
    %c0_36 = arith.constant 0 : index
    %c0_37 = arith.constant 0 : index
    %46 = vector.load %arg14[%c0_36, %c0_37] : memref<1x64xf32, #tpu.memory_space<vmem>>, vector<1x64xf32>
    %47 = vector.broadcast %46 : vector<1x64xf32> to vector<128x64xf32>
    %48 = arith.addf %45, %47 : vector<128x64xf32>
    %cst_38 = arith.constant 0.000000e+00 : f32
    %49 = vector.broadcast %cst_38 : f32 to vector<128x64xf32>
    %50 = arith.maximumf %48, %49 : vector<128x64xf32>
    %51 = arith.truncf %50 : vector<128x64xf32> to vector<128x64xbf16>
    %c0_39 = arith.constant 0 : index
    %c0_40 = arith.constant 0 : index
    %52 = vector.load %arg15[%c0_39, %c0_40] : memref<64x64xbf16, #tpu.memory_space<vmem>>, vector<64x64xbf16>
    %cst_41 = arith.constant dense<0.000000e+00> : vector<128x64xf32>
    %53 = tpu.matmul %51, %52, %cst_41 {dimension_numbers = #tpu.dot_dimension_numbers<[1], [0], [0], [1], [0, 0, 1, 1], [], []>} : vector<128x64xbf16>, vector<64x64xbf16>, vector<128x64xf32> -> vector<128x64xf32>
    %c0_42 = arith.constant 0 : index
    %c0_43 = arith.constant 0 : index
    %54 = vector.load %arg16[%c0_42, %c0_43] : memref<1x64xf32, #tpu.memory_space<vmem>>, vector<1x64xf32>
    %55 = vector.broadcast %54 : vector<1x64xf32> to vector<128x64xf32>
    %56 = arith.addf %53, %55 : vector<128x64xf32>
    %cst_44 = arith.constant 0.000000e+00 : f32
    %57 = vector.broadcast %cst_44 : f32 to vector<128x64xf32>
    %58 = arith.maximumf %56, %57 : vector<128x64xf32>
    %59 = arith.truncf %58 : vector<128x64xf32> to vector<128x64xbf16>
    %60 = arith.extf %59 : vector<128x64xbf16> to vector<128x64xf32>
    %c0_45 = arith.constant 0 : index
    %c0_46 = arith.constant 0 : index
    %61 = vector.load %arg17[%c0_45, %c0_46] : memref<1x64xf32, #tpu.memory_space<vmem>>, vector<1x64xf32>
    %62 = vector.broadcast %61 : vector<1x64xf32> to vector<128x64xf32>
    %63 = arith.mulf %60, %62 : vector<128x64xf32>
    %cst_47 = arith.constant dense<0.000000e+00> : vector<128xf32>
    %64 = vector.multi_reduction <add>, %63, %cst_47 [1] : vector<128x64xf32> to vector<128xf32>
    %65 = vector.shape_cast %64 : vector<128xf32> to vector<1x128xf32>
    %c0_48 = arith.constant 0 : index
    %c0_49 = arith.constant 0 : index
    %66 = vector.load %arg18[%c0_48, %c0_49] : memref<1x1xf32, #tpu.memory_space<vmem>>, vector<1x1xf32>
    %67 = vector.broadcast %66 : vector<1x1xf32> to vector<1x128xf32>
    %68 = arith.addf %65, %67 : vector<1x128xf32>
    %69 = math.tanh %68 : vector<1x128xf32>
    %c0_50 = arith.constant 0 : index
    %c0_51 = arith.constant 0 : index
    %70 = vector.load %arg19[%c0_50, %c0_51] : memref<1x128xf32, #tpu.memory_space<vmem>>, vector<1x128xf32>
    tpu.vector_store %arg19[%c0_50, %c0_51], %69 {strides = array<i32>} : memref<1x128xf32, #tpu.memory_space<vmem>>, vector<1x128xf32>,
    return
  }
  func.func @transform_0(%arg0: i32) -> (i32, i32) {
    %c0_i32 = arith.constant 0 : i32
    %c0_i32_0 = arith.constant 0 : i32
    return %arg0, %c0_i32 : i32, i32
  }
  func.func @transform_1(%arg0: i32) -> (i32, i32) {
    %c0_i32 = arith.constant 0 : i32
    %c0_i32_0 = arith.constant 0 : i32
    %c0_i32_1 = arith.constant 0 : i32
    return %c0_i32, %c0_i32_0 : i32, i32
  }
  func.func @transform_2(%arg0: i32) -> (i32, i32) {
    %c0_i32 = arith.constant 0 : i32
    %c0_i32_0 = arith.constant 0 : i32
    %c0_i32_1 = arith.constant 0 : i32
    return %c0_i32, %c0_i32_0 : i32, i32
  }
  func.func @transform_3(%arg0: i32) -> (i32, i32) {
    %c0_i32 = arith.constant 0 : i32
    %c0_i32_0 = arith.constant 0 : i32
    %c0_i32_1 = arith.constant 0 : i32
    return %c0_i32, %c0_i32_0 : i32, i32
  }
  func.func @transform_4(%arg0: i32) -> (i32, i32) {
    %c0_i32 = arith.constant 0 : i32
    %c0_i32_0 = arith.constant 0 : i32
    %c0_i32_1 = arith.constant 0 : i32
    return %c0_i32, %c0_i32_0 : i32, i32
  }
  func.func @transform_5(%arg0: i32) -> (i32, i32) {
    %c0_i32 = arith.constant 0 : i32
    %c0_i32_0 = arith.constant 0 : i32
    %c0_i32_1 = arith.constant 0 : i32
    return %c0_i32, %c0_i32_0 : i32, i32
  }
  func.func @transform_6(%arg0: i32) -> (i32, i32) {
    %c0_i32 = arith.constant 0 : i32
    %c0_i32_0 = arith.constant 0 : i32
    %c0_i32_1 = arith.constant 0 : i32
    return %c0_i32, %c0_i32_0 : i32, i32
  }
  func.func @transform_7(%arg0: i32) -> (i32, i32) {
    %c0_i32 = arith.constant 0 : i32
    %c0_i32_0 = arith.constant 0 : i32
    %c0_i32_1 = arith.constant 0 : i32
    return %c0_i32, %c0_i32_0 : i32, i32
  }
  func.func @transform_8(%arg0: i32) -> (i32, i32) {
    %c0_i32 = arith.constant 0 : i32
    %c0_i32_0 = arith.constant 0 : i32
    %c0_i32_1 = arith.constant 0 : i32
    return %c0_i32, %c0_i32_0 : i32, i32
  }
  func.func @transform_9(%arg0: i32) -> (i32, i32) {
    %c0_i32 = arith.constant 0 : i32
    %c0_i32_0 = arith.constant 0 : i32
    %c0_i32_1 = arith.constant 0 : i32
    return %c0_i32, %c0_i32_0 : i32, i32
  }
  func.func @transform_10(%arg0: i32) -> (i32, i32) {
    %c0_i32 = arith.constant 0 : i32
    %c0_i32_0 = arith.constant 0 : i32
    %c0_i32_1 = arith.constant 0 : i32
    return %c0_i32, %c0_i32_0 : i32, i32
  }
  func.func @transform_11(%arg0: i32) -> (i32, i32) {
    %c0_i32 = arith.constant 0 : i32
    %c0_i32_0 = arith.constant 0 : i32
    %c0_i32_1 = arith.constant 0 : i32
    return %c0_i32, %c0_i32_0 : i32, i32
  }
  func.func @transform_12(%arg0: i32) -> (i32, i32) {
    %c0_i32 = arith.constant 0 : i32
    %c0_i32_0 = arith.constant 0 : i32
    %c0_i32_1 = arith.constant 0 : i32
    return %c0_i32, %c0_i32_0 : i32, i32
  }
  func.func @transform_13(%arg0: i32) -> (i32, i32) {
    %c0_i32 = arith.constant 0 : i32
    %c0_i32_0 = arith.constant 0 : i32
    %c0_i32_1 = arith.constant 0 : i32
    return %c0_i32, %c0_i32_0 : i32, i32
  }
  func.func @transform_14(%arg0: i32) -> (i32, i32) {
    %c0_i32 = arith.constant 0 : i32
    %c0_i32_0 = arith.constant 0 : i32
    %c0_i32_1 = arith.constant 0 : i32
    return %c0_i32, %c0_i32_0 : i32, i32
  }
  func.func @transform_15(%arg0: i32) -> (i32, i32) {
    %c0_i32 = arith.constant 0 : i32
    %c0_i32_0 = arith.constant 0 : i32
    %c0_i32_1 = arith.constant 0 : i32
    return %c0_i32, %c0_i32_0 : i32, i32
  }
  func.func @transform_16(%arg0: i32) -> (i32, i32) {
    %c0_i32 = arith.constant 0 : i32
    %c0_i32_0 = arith.constant 0 : i32
    %c0_i32_1 = arith.constant 0 : i32
    return %c0_i32, %c0_i32_0 : i32, i32
  }
  func.func @transform_17(%arg0: i32) -> (i32, i32) {
    %c0_i32 = arith.constant 0 : i32
    %c0_i32_0 = arith.constant 0 : i32
    %c0_i32_1 = arith.constant 0 : i32
    return %c0_i32, %c0_i32_0 : i32, i32
  }
  func.func @transform_18(%arg0: i32) -> (i32, i32) {
    %c0_i32 = arith.constant 0 : i32
    %c0_i32_0 = arith.constant 0 : i32
    return %c0_i32, %arg0 : i32, i32
  }
}

</mosaic_0001>

<llo_original>
// kernel: tpu_custom_call.1
$region0: #{tpu_custom_call.1}
  #allocation0 [shape = 'u32[]', space=smem, size = 0x4, offset = 0x4, fixed_abs, tag = 'smem constant byte address 0x4 - core index']
  #allocation1 [shape = 'u32[144,128]{1,0:T(1,128)}', space=vmem, size = 0x12000, scoped, tag = 'internal scratch']
  #allocation2 [shape = 'f32[1,1]{1,0:T(1,128)S(1)}', space=vmem, size = 0x200, scoped, tag = 'scoped memory for tpu_custom_call.1']
  %s0 = inlined_call_operand.vmem [shape: bf16[256,32], index: 0, kind: input, shape index: {}]
  %s1 = inlined_call_operand.vmem [shape: bf16[32,64], index: 1, kind: input, shape index: {}]
  %s2 = inlined_call_operand.vmem [shape: f32[1,64], index: 2, kind: input, shape index: {}]
  %s3 = inlined_call_operand.vmem [shape: bf16[64,64], index: 3, kind: input, shape index: {}]
  %s4 = inlined_call_operand.vmem [shape: f32[1,64], index: 4, kind: input, shape index: {}]
  %s5 = inlined_call_operand.vmem [shape: bf16[64,64], index: 5, kind: input, shape index: {}]
  %s6 = inlined_call_operand.vmem [shape: f32[1,64], index: 6, kind: input, shape index: {}]
  %s7 = inlined_call_operand.vmem [shape: bf16[64,33], index: 7, kind: input, shape index: {}]
  %s8 = inlined_call_operand.vmem [shape: f32[1,33], index: 8, kind: input, shape index: {}]
  %s9 = inlined_call_operand.vmem [shape: bf16[33,64], index: 9, kind: input, shape index: {}]
  %s10 = inlined_call_operand.vmem [shape: bf16[32,64], index: 10, kind: input, shape index: {}]
  %s11 = inlined_call_operand.vmem [shape: f32[1,64], index: 11, kind: input, shape index: {}]
  %s12 = inlined_call_operand.vmem [shape: bf16[64,64], index: 12, kind: input, shape index: {}]
  %s13 = inlined_call_operand.vmem [shape: f32[1,64], index: 13, kind: input, shape index: {}]
  %s14 = inlined_call_operand.vmem [shape: bf16[64,64], index: 14, kind: input, shape index: {}]
  %s15 = inlined_call_operand.vmem [shape: f32[1,64], index: 15, kind: input, shape index: {}]
  %s16 = inlined_call_operand.vmem [shape: f32[1,64], index: 16, kind: input, shape index: {}]
  %s17 = inlined_call_operand.<no memory space> [shape: f32[1,1], index: 17, kind: input, shape index: {}]
  %s18 = inlined_call_operand.hbm [shape: f32[1,256], index: 18, kind: output, shape index: {}]
  %s19 = sld [smem:[#allocation0]]
  $region105: #{tpu_custom_call.1} parent=0
    _
  %s21 = ssub.s32 1, %s19
  %s22 = scalar_select 0, %s21, %s19
  %v23 = vstv %s17
  %24 = vst [vmem:[#allocation2] sm:$0x1] %v23
  $region1: #{tpu_custom_call.1} parent=0
    #allocation3 [shape = 'u8[1024]{0}', space=vmem, size = 0x400, scoped, tag = 'output window, operand 0']
    #allocation4 [shape = 's32[2]{0}', space=sflag, size = 0x8, scoped, tag = 'scoped memory for tpu_custom_call.1']
    %25 = vsyncpa [#allocation4], 0
    %s26 = scalar_lea.sflag [#allocation4], 1
    %27 = vsyncpa %s26, 0
    loop: start=0, step=1, limit=4
    $region2: #{tpu_custom_call.1} parent=1 // loop_pre_header
      _
    $region3: #{tpu_custom_call.1} parent=1 // loop_header
      %s29 = sphi 0, %s33
      %p30 = scmp.ge.s32.totalorder %s29, 4
      %s39 = sphi 0, %s41
      %s42 = sphi 0, %s39
      %s43 = sphi 0, %s42
      %s59 = sphi 0, %s43
      %s63 = sphi 0, %s63
      %s65 = sphi 0, %s63
      %s66 = sphi 0, %s65
      %s80 = sphi 0, %s66
      %s84 = sphi 0, %s84
      %s86 = sphi 0, %s84
      %s87 = sphi 0, %s86
      %s101 = sphi 0, %s87
      %s105 = sphi 0, %s105
      %s107 = sphi 0, %s105
      %s108 = sphi 0, %s107
      %s122 = sphi 0, %s108
      %s126 = sphi 0, %s126
      %s128 = sphi 0, %s126
      %s129 = sphi 0, %s128
      %s143 = sphi 0, %s129
      %s147 = sphi 0, %s147
      %s149 = sphi 0, %s147
      %s150 = sphi 0, %s149
      %s164 = sphi 0, %s150
      %s168 = sphi 0, %s168
      %s170 = sphi 0, %s168
      %s171 = sphi 0, %s170
      %s185 = sphi 0, %s171
      %s189 = sphi 0, %s189
      %s191 = sphi 0, %s189
      %s192 = sphi 0, %s191
      %s206 = sphi 0, %s192
      %s210 = sphi 0, %s210
      %s212 = sphi 0, %s210
      %s213 = sphi 0, %s212
      %s227 = sphi 0, %s213
      %s231 = sphi 0, %s231
      %s233 = sphi 0, %s231
      %s234 = sphi 0, %s233
      %s248 = sphi 0, %s234
      %s252 = sphi 0, %s252
      %s254 = sphi 0, %s252
      %s255 = sphi 0, %s254
      %s269 = sphi 0, %s255
      %s273 = sphi 0, %s273
      %s275 = sphi 0, %s273
      %s276 = sphi 0, %s275
      %s290 = sphi 0, %s276
      %s294 = sphi 0, %s294
      %s296 = sphi 0, %s294
      %s297 = sphi 0, %s296
      %s311 = sphi 0, %s297
      %s315 = sphi 0, %s315
      %s317 = sphi 0, %s315
      %s318 = sphi 0, %s317
      %s332 = sphi 0, %s318
      %s336 = sphi 0, %s336
      %s338 = sphi 0, %s336
      %s339 = sphi 0, %s338
      %s353 = sphi 0, %s339
      %s357 = sphi 0, %s357
      %s359 = sphi 0, %s357
      %s360 = sphi 0, %s359
      %s374 = sphi 0, %s360
      %s378 = sphi 0, %s378
      %s380 = sphi 0, %s378
      %s381 = sphi 0, %s380
      %s395 = sphi 0, %s381
      %s399 = sphi 0, %s399
      %s401 = sphi 0, %s399
      %s402 = sphi 0, %s401
      %s416 = sphi 0, %s402
      %s422 = sphi 0, %s424
      %s425 = sphi 0, %s422
      %s426 = sphi 0, %s425
      %s442 = sphi 0, %s426
    $region4: #{tpu_custom_call.1} parent=1 // loop_header_branch
      %32 = sbr.rel (%p30) target = $region8
    $region5: #{tpu_custom_call.1} parent=1 // loop_body
      %s34 = ssub.s32 %s29, 1
      %s35 = ssub.s32 %s29, 2
      %s36 = sadd.s32 %s29, 1
      %s37 = ssub.s32 %s29, %s36
      %p38 = scmp.eq.s32.totalorder %s37, 0
      %s40 = sadd.s32 %s39, 1
      %s41 = scalar_select %p38, %s39, %s40
      %p44 = pneg %p38
      %p45 = scmp.eq.s32.totalorder %s29, 1
      %p46 = por %p44, %p45
      %p47 = scmp.ne.s32.totalorder %s39, %s42
      %p48 = scmp.eq.s32.totalorder %s29, 0
      %p49 = por %p47, %p48
      %p50 = scmp.ne.s32.totalorder %s39, %s42
      %p51 = scmp.eq.s32.totalorder %s34, 1
      %p52 = por %p50, %p51
      %p53 = scmp.ne.s32.totalorder %s42, %s43
      %p54 = scmp.eq.s32.totalorder %s34, 0
      %p55 = por %p53, %p54
      %p56 = scmp.ne.s32.totalorder %s42, %s43
      %p57 = scmp.eq.s32.totalorder %s35, 1
      %p58 = por %p56, %p57
      %p60 = scmp.ne.s32.totalorder %s43, %s59
      %p61 = scmp.eq.s32.totalorder %s35, 0
      %p62 = por %p60, %p61
      %s64 = sadd.s32 %s63, 1
      %p67 = scmp.eq.s32.totalorder %s29, 1
      %p68 = scmp.ne.s32.totalorder %s63, %s65
      %p69 = scmp.eq.s32.totalorder %s29, 0
      %p70 = por %p68, %p69
      %p71 = scmp.ne.s32.totalorder %s63, %s65
      %p72 = scmp.eq.s32.totalorder %s34, 1
      %p73 = por %p71, %p72
      %p74 = scmp.ne.s32.totalorder %s65, %s66
      %p75 = scmp.eq.s32.totalorder %s34, 0
      %p76 = por %p74, %p75
      %p77 = scmp.ne.s32.totalorder %s65, %s66
      %p78 = scmp.eq.s32.totalorder %s35, 1
      %p79 = por %p77, %p78
      %p81 = scmp.ne.s32.totalorder %s66, %s80
      %p82 = scmp.eq.s32.totalorder %s35, 0
      %p83 = por %p81, %p82
      %s85 = sadd.s32 %s84, 1
      %p88 = scmp.eq.s32.totalorder %s29, 1
      %p89 = scmp.ne.s32.totalorder %s84, %s86
      %p90 = scmp.eq.s32.totalorder %s29, 0
      %p91 = por %p89, %p90
      %p92 = scmp.ne.s32.totalorder %s84, %s86
      %p93 = scmp.eq.s32.totalorder %s34, 1
      %p94 = por %p92, %p93
      %p95 = scmp.ne.s32.totalorder %s86, %s87
      %p96 = scmp.eq.s32.totalorder %s34, 0
      %p97 = por %p95, %p96
      %p98 = scmp.ne.s32.totalorder %s86, %s87
      %p99 = scmp.eq.s32.totalorder %s35, 1
      %p100 = por %p98, %p99
      %p102 = scmp.ne.s32.totalorder %s87, %s101
      %p103 = scmp.eq.s32.totalorder %s35, 0
      %p104 = por %p102, %p103
      %s106 = sadd.s32 %s105, 1
      %p109 = scmp.eq.s32.totalorder %s29, 1
      %p110 = scmp.ne.s32.totalorder %s105, %s107
      %p111 = scmp.eq.s32.totalorder %s29, 0
      %p112 = por %p110, %p111
      %p113 = scmp.ne.s32.totalorder %s105, %s107
      %p114 = scmp.eq.s32.totalorder %s34, 1
      %p115 = por %p113, %p114
      %p116 = scmp.ne.s32.totalorder %s107, %s108
      %p117 = scmp.eq.s32.totalorder %s34, 0
      %p118 = por %p116, %p117
      %p119 = scmp.ne.s32.totalorder %s107, %s108
      %p120 = scmp.eq.s32.totalorder %s35, 1
      %p121 = por %p119, %p120
      %p123 = scmp.ne.s32.totalorder %s108, %s122
      %p124 = scmp.eq.s32.totalorder %s35, 0
      %p125 = por %p123, %p124
      %s127 = sadd.s32 %s126, 1
      %p130 = scmp.eq.s32.totalorder %s29, 1
      %p131 = scmp.ne.s32.totalorder %s126, %s128
      %p132 = scmp.eq.s32.totalorder %s29, 0
      %p133 = por %p131, %p132
      %p134 = scmp.ne.s32.totalorder %s126, %s128
      %p135 = scmp.eq.s32.totalorder %s34, 1
      %p136 = por %p134, %p135
      %p137 = scmp.ne.s32.totalorder %s128, %s129
      %p138 = scmp.eq.s32.totalorder %s34, 0
      %p139 = por %p137, %p138
      %p140 = scmp.ne.s32.totalorder %s128, %s129
      %p141 = scmp.eq.s32.totalorder %s35, 1
      %p142 = por %p140, %p141
      %p144 = scmp.ne.s32.totalorder %s129, %s143
      %p145 = scmp.eq.s32.totalorder %s35, 0
      %p146 = por %p144, %p145
      %s148 = sadd.s32 %s147, 1
      %p151 = scmp.eq.s32.totalorder %s29, 1
      %p152 = scmp.ne.s32.totalorder %s147, %s149
      %p153 = scmp.eq.s32.totalorder %s29, 0
      %p154 = por %p152, %p153
      %p155 = scmp.ne.s32.totalorder %s147, %s149
      %p156 = scmp.eq.s32.totalorder %s34, 1
      %p157 = por %p155, %p156
      %p158 = scmp.ne.s32.totalorder %s149, %s150
      %p159 = scmp.eq.s32.totalorder %s34, 0
      %p160 = por %p158, %p159
      %p161 = scmp.ne.s32.totalorder %s149, %s150
      %p162 = scmp.eq.s32.totalorder %s35, 1
      %p163 = por %p161, %p162
      %p165 = scmp.ne.s32.totalorder %s150, %s164
      %p166 = scmp.eq.s32.totalorder %s35, 0
      %p167 = por %p165, %p166
      %s169 = sadd.s32 %s168, 1
      %p172 = scmp.eq.s32.totalorder %s29, 1
      %p173 = scmp.ne.s32.totalorder %s168, %s170
      %p174 = scmp.eq.s32.totalorder %s29, 0
      %p175 = por %p173, %p174
      %p176 = scmp.ne.s32.totalorder %s168, %s170
      %p177 = scmp.eq.s32.totalorder %s34, 1
      %p178 = por %p176, %p177
      %p179 = scmp.ne.s32.totalorder %s170, %s171
      %p180 = scmp.eq.s32.totalorder %s34, 0
      %p181 = por %p179, %p180
      %p182 = scmp.ne.s32.totalorder %s170, %s171
      %p183 = scmp.eq.s32.totalorder %s35, 1
      %p184 = por %p182, %p183
      %p186 = scmp.ne.s32.totalorder %s171, %s185
      %p187 = scmp.eq.s32.totalorder %s35, 0
      %p188 = por %p186, %p187
      %s190 = sadd.s32 %s189, 1
      %p193 = scmp.eq.s32.totalorder %s29, 1
      %p194 = scmp.ne.s32.totalorder %s189, %s191
      %p195 = scmp.eq.s32.totalorder %s29, 0
      %p196 = por %p194, %p195
      %p197 = scmp.ne.s32.totalorder %s189, %s191
      %p198 = scmp.eq.s32.totalorder %s34, 1
      %p199 = por %p197, %p198
      %p200 = scmp.ne.s32.totalorder %s191, %s192
      %p201 = scmp.eq.s32.totalorder %s34, 0
      %p202 = por %p200, %p201
      %p203 = scmp.ne.s32.totalorder %s191, %s192
      %p204 = scmp.eq.s32.totalorder %s35, 1
      %p205 = por %p203, %p204
      %p207 = scmp.ne.s32.totalorder %s192, %s206
      %p208 = scmp.eq.s32.totalorder %s35, 0
      %p209 = por %p207, %p208
      %s211 = sadd.s32 %s210, 1
      %p214 = scmp.eq.s32.totalorder %s29, 1
      %p215 = scmp.ne.s32.totalorder %s210, %s212
      %p216 = scmp.eq.s32.totalorder %s29, 0
      %p217 = por %p215, %p216
      %p218 = scmp.ne.s32.totalorder %s210, %s212
      %p219 = scmp.eq.s32.totalorder %s34, 1
      %p220 = por %p218, %p219
      %p221 = scmp.ne.s32.totalorder %s212, %s213
      %p222 = scmp.eq.s32.totalorder %s34, 0
      %p223 = por %p221, %p222
      %p224 = scmp.ne.s32.totalorder %s212, %s213
      %p225 = scmp.eq.s32.totalorder %s35, 1
      %p226 = por %p224, %p225
      %p228 = scmp.ne.s32.totalorder %s213, %s227
      %p229 = scmp.eq.s32.totalorder %s35, 0
      %p230 = por %p228, %p229
      %s232 = sadd.s32 %s231, 1
      %p235 = scmp.eq.s32.totalorder %s29, 1
      %p236 = scmp.ne.s32.totalorder %s231, %s233
      %p237 = scmp.eq.s32.totalorder %s29, 0
      %p238 = por %p236, %p237
      %p239 = scmp.ne.s32.totalorder %s231, %s233
      %p240 = scmp.eq.s32.totalorder %s34, 1
      %p241 = por %p239, %p240
      %p242 = scmp.ne.s32.totalorder %s233, %s234
      %p243 = scmp.eq.s32.totalorder %s34, 0
      %p244 = por %p242, %p243
      %p245 = scmp.ne.s32.totalorder %s233, %s234
      %p246 = scmp.eq.s32.totalorder %s35, 1
      %p247 = por %p245, %p246
      %p249 = scmp.ne.s32.totalorder %s234, %s248
      %p250 = scmp.eq.s32.totalorder %s35, 0
      %p251 = por %p249, %p250
      %s253 = sadd.s32 %s252, 1
      %p256 = scmp.eq.s32.totalorder %s29, 1
      %p257 = scmp.ne.s32.totalorder %s252, %s254
      %p258 = scmp.eq.s32.totalorder %s29, 0
      %p259 = por %p257, %p258
      %p260 = scmp.ne.s32.totalorder %s252, %s254
      %p261 = scmp.eq.s32.totalorder %s34, 1
      %p262 = por %p260, %p261
      %p263 = scmp.ne.s32.totalorder %s254, %s255
      %p264 = scmp.eq.s32.totalorder %s34, 0
      %p265 = por %p263, %p264
      %p266 = scmp.ne.s32.totalorder %s254, %s255
      %p267 = scmp.eq.s32.totalorder %s35, 1
      %p268 = por %p266, %p267
      %p270 = scmp.ne.s32.totalorder %s255, %s269
      %p271 = scmp.eq.s32.totalorder %s35, 0
      %p272 = por %p270, %p271
      %s274 = sadd.s32 %s273, 1
      %p277 = scmp.eq.s32.totalorder %s29, 1
      %p278 = scmp.ne.s32.totalorder %s273, %s275
      %p279 = scmp.eq.s32.totalorder %s29, 0
      %p280 = por %p278, %p279
      %p281 = scmp.ne.s32.totalorder %s273, %s275
      %p282 = scmp.eq.s32.totalorder %s34, 1
      %p283 = por %p281, %p282
      %p284 = scmp.ne.s32.totalorder %s275, %s276
      %p285 = scmp.eq.s32.totalorder %s34, 0
      %p286 = por %p284, %p285
      %p287 = scmp.ne.s32.totalorder %s275, %s276
      %p288 = scmp.eq.s32.totalorder %s35, 1
      %p289 = por %p287, %p288
      %p291 = scmp.ne.s32.totalorder %s276, %s290
      %p292 = scmp.eq.s32.totalorder %s35, 0
      %p293 = por %p291, %p292
      %s295 = sadd.s32 %s294, 1
      %p298 = scmp.eq.s32.totalorder %s29, 1
      %p299 = scmp.ne.s32.totalorder %s294, %s296
      %p300 = scmp.eq.s32.totalorder %s29, 0
      %p301 = por %p299, %p300
      %p302 = scmp.ne.s32.totalorder %s294, %s296
      %p303 = scmp.eq.s32.totalorder %s34, 1
      %p304 = por %p302, %p303
      %p305 = scmp.ne.s32.totalorder %s296, %s297
      %p306 = scmp.eq.s32.totalorder %s34, 0
      %p307 = por %p305, %p306
      %p308 = scmp.ne.s32.totalorder %s296, %s297
      %p309 = scmp.eq.s32.totalorder %s35, 1
      %p310 = por %p308, %p309
      %p312 = scmp.ne.s32.totalorder %s297, %s311
      %p313 = scmp.eq.s32.totalorder %s35, 0
      %p314 = por %p312, %p313
      %s316 = sadd.s32 %s315, 1
      %p319 = scmp.eq.s32.totalorder %s29, 1
      %p320 = scmp.ne.s32.totalorder %s315, %s317
      %p321 = scmp.eq.s32.totalorder %s29, 0
      %p322 = por %p320, %p321
      %p323 = scmp.ne.s32.totalorder %s315, %s317
      %p324 = scmp.eq.s32.totalorder %s34, 1
      %p325 = por %p323, %p324
      %p326 = scmp.ne.s32.totalorder %s317, %s318
      %p327 = scmp.eq.s32.totalorder %s34, 0
      %p328 = por %p326, %p327
      %p329 = scmp.ne.s32.totalorder %s317, %s318
      %p330 = scmp.eq.s32.totalorder %s35, 1
      %p331 = por %p329, %p330
      %p333 = scmp.ne.s32.totalorder %s318, %s332
      %p334 = scmp.eq.s32.totalorder %s35, 0
      %p335 = por %p333, %p334
      %s337 = sadd.s32 %s336, 1
      %p340 = scmp.eq.s32.totalorder %s29, 1
      %p341 = scmp.ne.s32.totalorder %s336, %s338
      %p342 = scmp.eq.s32.totalorder %s29, 0
      %p343 = por %p341, %p342
      %p344 = scmp.ne.s32.totalorder %s336, %s338
      %p345 = scmp.eq.s32.totalorder %s34, 1
      %p346 = por %p344, %p345
      %p347 = scmp.ne.s32.totalorder %s338, %s339
      %p348 = scmp.eq.s32.totalorder %s34, 0
      %p349 = por %p347, %p348
      %p350 = scmp.ne.s32.totalorder %s338, %s339
      %p351 = scmp.eq.s32.totalorder %s35, 1
      %p352 = por %p350, %p351
      %p354 = scmp.ne.s32.totalorder %s339, %s353
      %p355 = scmp.eq.s32.totalorder %s35, 0
      %p356 = por %p354, %p355
      %s358 = sadd.s32 %s357, 1
      %p361 = scmp.eq.s32.totalorder %s29, 1
      %p362 = scmp.ne.s32.totalorder %s357, %s359
      %p363 = scmp.eq.s32.totalorder %s29, 0
      %p364 = por %p362, %p363
      %p365 = scmp.ne.s32.totalorder %s357, %s359
      %p366 = scmp.eq.s32.totalorder %s34, 1
      %p367 = por %p365, %p366
      %p368 = scmp.ne.s32.totalorder %s359, %s360
      %p369 = scmp.eq.s32.totalorder %s34, 0
      %p370 = por %p368, %p369
      %p371 = scmp.ne.s32.totalorder %s359, %s360
      %p372 = scmp.eq.s32.totalorder %s35, 1
      %p373 = por %p371, %p372
      %p375 = scmp.ne.s32.totalorder %s360, %s374
      %p376 = scmp.eq.s32.totalorder %s35, 0
      %p377 = por %p375, %p376
      %s379 = sadd.s32 %s378, 1
      %p382 = scmp.eq.s32.totalorder %s29, 1
      %p383 = scmp.ne.s32.totalorder %s378, %s380
      %p384 = scmp.eq.s32.totalorder %s29, 0
      %p385 = por %p383, %p384
      %p386 = scmp.ne.s32.totalorder %s378, %s380
      %p387 = scmp.eq.s32.totalorder %s34, 1
      %p388 = por %p386, %p387
      %p389 = scmp.ne.s32.totalorder %s380, %s381
      %p390 = scmp.eq.s32.totalorder %s34, 0
      %p391 = por %p389, %p390
      %p392 = scmp.ne.s32.totalorder %s380, %s381
      %p393 = scmp.eq.s32.totalorder %s35, 1
      %p394 = por %p392, %p393
      %p396 = scmp.ne.s32.totalorder %s381, %s395
      %p397 = scmp.eq.s32.totalorder %s35, 0
      %p398 = por %p396, %p397
      %s400 = sadd.s32 %s399, 1
      %p403 = scmp.eq.s32.totalorder %s29, 1
      %p404 = scmp.ne.s32.totalorder %s399, %s401
      %p405 = scmp.eq.s32.totalorder %s29, 0
      %p406 = por %p404, %p405
      %p407 = scmp.ne.s32.totalorder %s399, %s401
      %p408 = scmp.eq.s32.totalorder %s34, 1
      %p409 = por %p407, %p408
      %p410 = scmp.ne.s32.totalorder %s401, %s402
      %p411 = scmp.eq.s32.totalorder %s34, 0
      %p412 = por %p410, %p411
      %p413 = scmp.ne.s32.totalorder %s401, %s402
      %p414 = scmp.eq.s32.totalorder %s35, 1
      %p415 = por %p413, %p414
      %p417 = scmp.ne.s32.totalorder %s402, %s416
      %p418 = scmp.eq.s32.totalorder %s35, 0
      %p419 = por %p417, %p418
      %s420 = ssub.s32 %s29, %s36
      %p421 = scmp.eq.s32.totalorder %s420, 0
      %s423 = sadd.s32 %s422, 1
      %s424 = scalar_select %p421, %s422, %s423
      %p427 = pneg %p421
      %p428 = scmp.eq.s32.totalorder %s29, 1
      %p429 = por %p427, %p428
      %p430 = scmp.ne.s32.totalorder %s422, %s425
      %p431 = scmp.eq.s32.totalorder %s29, 0
      %p432 = por %p430, %p431
      %p433 = scmp.ne.s32.totalorder %s422, %s425
      %p434 = scmp.eq.s32.totalorder %s34, 1
      %p435 = por %p433, %p434
      %p436 = scmp.ne.s32.totalorder %s425, %s426
      %p437 = scmp.eq.s32.totalorder %s34, 0
      %p438 = por %p436, %p437
      %p439 = scmp.ne.s32.totalorder %s425, %s426
      %p440 = scmp.eq.s32.totalorder %s35, 1
      %p441 = por %p439, %p440
      %p443 = scmp.ne.s32.totalorder %s426, %s442
      %p444 = scmp.eq.s32.totalorder %s35, 0
      %p445 = por %p443, %p444
      %p446 = scmp.le.s32.totalorder 1, %s29
      %p447 = scmp.lt.s32.totalorder %s29, 3
      %p448 = pnand %p446, %p447
      %p449 = pneg %p448
      // Predicated region
      $region9: #{tpu_custom_call.1} parent=5 // pred_check
        _
      $region10: #{tpu_custom_call.1} parent=5 // pred_check_branch
        %451 = sbr.rel (%p448) target = $region12
      $region11: #{tpu_custom_call.1} parent=5 // pred_region
        %s452 = ssub.s32 %s29, 1
        // Predicated region
        $region13: #{tpu_custom_call.1} parent=11 // pred_check
          %p453 = pneg %p76
        $region14: #{tpu_custom_call.1} parent=11 // pred_check_branch
          %455 = sbr.rel (%p453) target = $region16
        $region15: #{tpu_custom_call.1} parent=11 // pred_region
          _
        $region16: #{tpu_custom_call.1} parent=11 // pred_fallthru
          _
        // Predicated region
        $region17: #{tpu_custom_call.1} parent=11 // pred_check
          %p456 = pneg %p97
        $region18: #{tpu_custom_call.1} parent=11 // pred_check_branch
          %458 = sbr.rel (%p456) target = $region20
        $region19: #{tpu_custom_call.1} parent=11 // pred_region
          _
        $region20: #{tpu_custom_call.1} parent=11 // pred_fallthru
          _
        // Predicated region
        $region21: #{tpu_custom_call.1} parent=11 // pred_check
          %p459 = pneg %p118
        $region22: #{tpu_custom_call.1} parent=11 // pred_check_branch
          %461 = sbr.rel (%p459) target = $region24
        $region23: #{tpu_custom_call.1} parent=11 // pred_region
          _
        $region24: #{tpu_custom_call.1} parent=11 // pred_fallthru
          _
        // Predicated region
        $region25: #{tpu_custom_call.1} parent=11 // pred_check
          %p462 = pneg %p139
        $region26: #{tpu_custom_call.1} parent=11 // pred_check_branch
          %464 = sbr.rel (%p462) target = $region28
        $region27: #{tpu_custom_call.1} parent=11 // pred_region
          _
        $region28: #{tpu_custom_call.1} parent=11 // pred_fallthru
          _
        // Predicated region
        $region29: #{tpu_custom_call.1} parent=11 // pred_check
          %p465 = pneg %p160
        $region30: #{tpu_custom_call.1} parent=11 // pred_check_branch
          %467 = sbr.rel (%p465) target = $region32
        $region31: #{tpu_custom_call.1} parent=11 // pred_region
          _
        $region32: #{tpu_custom_call.1} parent=11 // pred_fallthru
          _
        // Predicated region
        $region33: #{tpu_custom_call.1} parent=11 // pred_check
          %p468 = pneg %p181
        $region34: #{tpu_custom_call.1} parent=11 // pred_check_branch
          %470 = sbr.rel (%p468) target = $region36
        $region35: #{tpu_custom_call.1} parent=11 // pred_region
          _
        $region36: #{tpu_custom_call.1} parent=11 // pred_fallthru
          _
        // Predicated region
        $region37: #{tpu_custom_call.1} parent=11 // pred_check
          %p471 = pneg %p202
        $region38: #{tpu_custom_call.1} parent=11 // pred_check_branch
          %473 = sbr.rel (%p471) target = $region40
        $region39: #{tpu_custom_call.1} parent=11 // pred_region
          _
        $region40: #{tpu_custom_call.1} parent=11 // pred_fallthru
          _
        // Predicated region
        $region41: #{tpu_custom_call.1} parent=11 // pred_check
          %p474 = pneg %p223
        $region42: #{tpu_custom_call.1} parent=11 // pred_check_branch
          %476 = sbr.rel (%p474) target = $region44
        $region43: #{tpu_custom_call.1} parent=11 // pred_region
          _
        $region44: #{tpu_custom_call.1} parent=11 // pred_fallthru
          _
        // Predicated region
        $region45: #{tpu_custom_call.1} parent=11 // pred_check
          %p477 = pneg %p244
        $region46: #{tpu_custom_call.1} parent=11 // pred_check_branch
          %479 = sbr.rel (%p477) target = $region48
        $region47: #{tpu_custom_call.1} parent=11 // pred_region
          _
        $region48: #{tpu_custom_call.1} parent=11 // pred_fallthru
          _
        // Predicated region
        $region49: #{tpu_custom_call.1} parent=11 // pred_check
          %p480 = pneg %p265
        $region50: #{tpu_custom_call.1} parent=11 // pred_check_branch
          %482 = sbr.rel (%p480) target = $region52
        $region51: #{tpu_custom_call.1} parent=11 // pred_region
          _
        $region52: #{tpu_custom_call.1} parent=11 // pred_fallthru
          _
        // Predicated region
        $region53: #{tpu_custom_call.1} parent=11 // pred_check
          %p483 = pneg %p286
        $region54: #{tpu_custom_call.1} parent=11 // pred_check_branch
          %485 = sbr.rel (%p483) target = $region56
        $region55: #{tpu_custom_call.1} parent=11 // pred_region
          _
        $region56: #{tpu_custom_call.1} parent=11 // pred_fallthru
          _
        // Predicated region
        $region57: #{tpu_custom_call.1} parent=11 // pred_check
          %p486 = pneg %p307
        $region58: #{tpu_custom_call.1} parent=11 // pred_check_branch
          %488 = sbr.rel (%p486) target = $region60
        $region59: #{tpu_custom_call.1} parent=11 // pred_region
          _
        $region60: #{tpu_custom_call.1} parent=11 // pred_fallthru
          _
        // Predicated region
        $region61: #{tpu_custom_call.1} parent=11 // pred_check
          %p489 = pneg %p328
        $region62: #{tpu_custom_call.1} parent=11 // pred_check_branch
          %491 = sbr.rel (%p489) target = $region64
        $region63: #{tpu_custom_call.1} parent=11 // pred_region
          _
        $region64: #{tpu_custom_call.1} parent=11 // pred_fallthru
          _
        // Predicated region
        $region65: #{tpu_custom_call.1} parent=11 // pred_check
          %p492 = pneg %p349
        $region66: #{tpu_custom_call.1} parent=11 // pred_check_branch
          %494 = sbr.rel (%p492) target = $region68
        $region67: #{tpu_custom_call.1} parent=11 // pred_region
          _
        $region68: #{tpu_custom_call.1} parent=11 // pred_fallthru
          _
        // Predicated region
        $region69: #{tpu_custom_call.1} parent=11 // pred_check
          %p495 = pneg %p370
        $region70: #{tpu_custom_call.1} parent=11 // pred_check_branch
          %497 = sbr.rel (%p495) target = $region72
        $region71: #{tpu_custom_call.1} parent=11 // pred_region
          _
        $region72: #{tpu_custom_call.1} parent=11 // pred_fallthru
          _
        // Predicated region
        $region73: #{tpu_custom_call.1} parent=11 // pred_check
          %p498 = pneg %p391
        $region74: #{tpu_custom_call.1} parent=11 // pred_check_branch
          %500 = sbr.rel (%p498) target = $region76
        $region75: #{tpu_custom_call.1} parent=11 // pred_region
          _
        $region76: #{tpu_custom_call.1} parent=11 // pred_fallthru
          _
        // Predicated region
        $region77: #{tpu_custom_call.1} parent=11 // pred_check
          %p501 = pneg %p412
        $region78: #{tpu_custom_call.1} parent=11 // pred_check_branch
          %503 = sbr.rel (%p501) target = $region80
        $region79: #{tpu_custom_call.1} parent=11 // pred_region
          _
        $region80: #{tpu_custom_call.1} parent=11 // pred_fallthru
          _
      $region12: #{tpu_custom_call.1} parent=5 // pred_fallthru
        _
      %p504 = scmp.lt.s32.totalorder %s29, 2
      // Predicated region
      $region81: #{tpu_custom_call.1} parent=5 // pred_check
        %p505 = pneg %p504
      $region82: #{tpu_custom_call.1} parent=5 // pred_check_branch
        %507 = sbr.rel (%p505) target = $region84
      $region83: #{tpu_custom_call.1} parent=5 // pred_region
        // Predicated region
        $region85: #{tpu_custom_call.1} parent=83 // pred_check
          %p508 = pneg %p49
        $region86: #{tpu_custom_call.1} parent=83 // pred_check_branch
          %510 = sbr.rel (%p508) target = $region88
        $region87: #{tpu_custom_call.1} parent=83 // pred_region
          %s511 = smul.u32 16, %s29
          %p512 = scmp.lt.s32.totalorder %s511, 31
          %s513 = scalar_select %p512, %s511, 31
          %s514 = smul.addr %s513, 4
          %s515 = scalar_lea.vmem %s0, %s514
          %s516 = smul.u32 16, %s29
        $region88: #{tpu_custom_call.1} parent=83 // pred_fallthru
          _
      $region84: #{tpu_custom_call.1} parent=5 // pred_fallthru
        _
      %p517 = scmp.le.s32.totalorder 1, %s29
      %p518 = scmp.lt.s32.totalorder %s29, 3
      %p519 = pnand %p517, %p518
      %p520 = pneg %p519
      // Predicated region
      $region89: #{tpu_custom_call.1} parent=5 // pred_check
        _
      $region90: #{tpu_custom_call.1} parent=5 // pred_check_branch
        %522 = sbr.rel (%p519) target = $region92
      $region91: #{tpu_custom_call.1} parent=5 // pred_region
        %s523 = ssub.s32 %s29, 1
        %s524 = smul.u32 16, %s34
        %p525 = scmp.lt.s32.totalorder %s524, 31
        %s526 = scalar_select %p525, %s524, 31
        %s527 = smul.addr %s526, 4
        %s528 = scalar_lea.vmem %s0, %s527
        %p529 = pneg %p55
        %p530 = pneg %p52
        %p531 = pneg %p76
        %p532 = pneg %p73
        %p533 = pneg %p97
        %p534 = pneg %p94
        %p535 = pneg %p118
        %p536 = pneg %p115
        %p537 = pneg %p139
        %p538 = pneg %p136
        %p539 = pneg %p160
        %p540 = pneg %p157
        %p541 = pneg %p181
        %p542 = pneg %p178
        %p543 = pneg %p202
        %p544 = pneg %p199
        %p545 = pneg %p223
        %p546 = pneg %p220
        %p547 = pneg %p244
        %p548 = pneg %p241
        %p549 = pneg %p265
        %p550 = pneg %p262
        %p551 = pneg %p286
        %p552 = pneg %p283
        %p553 = pneg %p307
        %p554 = pneg %p304
        %p555 = pneg %p328
        %p556 = pneg %p325
        %p557 = pneg %p349
        %p558 = pneg %p346
        %p559 = pneg %p370
        %p560 = pneg %p367
        %p561 = pneg %p391
        %p562 = pneg %p388
        %p563 = pneg %p412
        %p564 = pneg %p409
        %p565 = pneg %p438
        %p566 = pneg %p435
        %s567 = sand.u32 %s425, 1
        %s568 = scalar_lea.sflag [#allocation4], %s567
        %s569 = sand.u32 %s425, 1
        %s570 = scalar_lea.vmem [#allocation3], %s569
        %s571 = smul.u32 16, %s34
        %p572 = scmp.lt.s32.totalorder %s571, 31
        %s573 = scalar_select %p572, %s571, 31
        %s574 = smul.addr %s573, 4
        %s575 = scalar_lea.vmem %s0, %s574
        %s576 = smul.u32 16, %s34
        %v578 = vld [vmem:[%s575] sm:$0xf]
        %v579 = vld [vmem:[%s575 + $0x4] sm:$0xf]
        %v580 = vld [vmem:[%s575 + $0x8] sm:$0xf]
        %v581 = vld [vmem:[%s575 + $0xc] sm:$0xf]
        %v582 = vld [vmem:[%s575 + $0x10] sm:$0xf]
        %v583 = vld [vmem:[%s575 + $0x14] sm:$0xf]
        %v584 = vld [vmem:[%s575 + $0x18] sm:$0xf]
        %v585 = vld [vmem:[%s575 + $0x1c] sm:$0xf]
        %v586 = vld [vmem:[%s575 + $0x20] sm:$0xf]
        %v587 = vld [vmem:[%s575 + $0x24] sm:$0xf]
        %v588 = vld [vmem:[%s575 + $0x28] sm:$0xf]
        %v589 = vld [vmem:[%s575 + $0x2c] sm:$0xf]
        %v590 = vld [vmem:[%s575 + $0x30] sm:$0xf]
        %v591 = vld [vmem:[%s575 + $0x34] sm:$0xf]
        %v592 = vld [vmem:[%s575 + $0x38] sm:$0xf]
        %v593 = vld [vmem:[%s575 + $0x3c] sm:$0xf]
        %v594 = vld [vmem:[%s1] sm:$0xf]
        %v595 = vld [vmem:[%s1 + $0x4] sm:$0xf]
        %v596 = vld [vmem:[%s1 + $0x8] sm:$0xf]
        %v597 = vld [vmem:[%s1 + $0xc] sm:$0xf]
        %v598 = vld [vmem:[%s2] sm:$0x1]
        %v600 = vlaneseq
        %v601 = vshrl.u32 %v600, 7
        %v602 = vsub.s32 0, %v601
        %v603 = vrot.slane %v598, %v602
        %v621 = vunpack.c.l.b16 %v578
        %v622 = vunpack.c.l.b16 %v579
        %v623 = vunpack.c.l.b16 %v580
        %v624 = vunpack.c.l.b16 %v581
        %v625 = vunpack.c.l.b16 %v582
        %v626 = vunpack.c.l.b16 %v583
        %v627 = vunpack.c.l.b16 %v584
        %v628 = vunpack.c.l.b16 %v585
        %v629 = vunpack.c.l.b16 %v586
        %v630 = vunpack.c.l.b16 %v587
        %v631 = vunpack.c.l.b16 %v588
        %v632 = vunpack.c.l.b16 %v589
        %v633 = vunpack.c.l.b16 %v590
        %v634 = vunpack.c.l.b16 %v591
        %v635 = vunpack.c.l.b16 %v592
        %v636 = vunpack.c.l.b16 %v593
        %v637 = vpack.c.b16 %v622, %v621
        %v638 = vpack.c.b16 %v624, %v623
        %v639 = vpack.c.b16 %v626, %v625
        %v640 = vpack.c.b16 %v628, %v627
        %v641 = vpack.c.b16 %v630, %v629
        %v642 = vpack.c.b16 %v632, %v631
        %v643 = vpack.c.b16 %v634, %v633
        %v644 = vpack.c.b16 %v636, %v635
        %v649 = vunpack.c.l.b16 %v594
        %v650 = vunpack.c.l.b16 %v595
        %v651 = vunpack.c.l.b16 %v596
        %v652 = vunpack.c.l.b16 %v597
        %v653 = vpack.c.b16 %v650, %v649
        %v654 = vpack.c.b16 %v652, %v651
        %vm657 = vcmask 261120
        %v659 = vsel %vm657, %v637, 0
        %v662 = vsel %vm657, %v638, 0
        %v665 = vsel %vm657, %v639, 0
        %v668 = vsel %vm657, %v640, 0
        %v671 = vsel %vm657, %v641, 0
        %v674 = vsel %vm657, %v642, 0
        %v677 = vsel %vm657, %v643, 0
        %v680 = vsel %vm657, %v644, 0
        %682 = vmatprep.subr.bf16.mxu0 0
        %683 = vmatpush1.bf16.msra.mxu0 0
        %684 = vmatprep.subr.bf16.mxu0 0
        %685 = vmatpush1.bf16.msra.mxu0 0
        %686 = vmatprep.subr.bf16.mxu0 0
        %687 = vmatpush1.bf16.msra.mxu0 0
        %688 = vmatprep.subr.bf16.mxu0 0
        %689 = vmatpush1.bf16.msra.mxu0 0
        %690 = vmatprep.subr.bf16.mxu0 0
        %691 = vmatpush1.bf16.msra.mxu0 0
        %692 = vmatprep.subr.bf16.mxu0 0
        %693 = vmatpush1.bf16.msra.mxu0 0
        %694 = vmatprep.subr.bf16.mxu0 0
        %695 = vmatpush1.bf16.msra.mxu0 %v654
        %696 = vmatprep.subr.bf16.mxu0 0
        %697 = vmatpush1.bf16.msra.mxu0 %v653
        %698 = vmatprep.subr.bf16.mxu0 0
        %699 = vmatpush2.bf16.msra.mxu0 0
        %700 = vmatprep.subr.bf16.mxu0 0
        %701 = vmatpush2.bf16.msra.mxu0 0
        %702 = vmatprep.subr.bf16.mxu0 0
        %703 = vmatpush2.bf16.msra.mxu0 0
        %704 = vmatprep.subr.bf16.mxu0 0
        %705 = vmatpush2.bf16.msra.mxu0 0
        %706 = vmatprep.subr.bf16.mxu0 0
        %707 = vmatpush2.bf16.msra.mxu0 0
        %708 = vmatprep.subr.bf16.mxu0 0
        %709 = vmatpush2.bf16.msra.mxu0 0
        %710 = vmatprep.subr.bf16.mxu0 0
        %711 = vmatpush2.bf16.msra.mxu0 0
        %712 = vmatprep.subr.bf16.mxu0 0
        %713 = vmatpush2.bf16.msra.mxu0 0
        %714 = vmatprep.mubr.bf16.mxu0 0
        %715 = vmatmul.mubr.bf16.gmra.mxu0 %v659
        %v716 = vpop.f32.mrf.mxu0
        %v717 = vadd.f32 %v603, %v716
        %v718 = vpop.f32.mrf.mxu0
        %v719 = vpop.f32.mrf.mxu0
        %v720 = vadd.f32 %v603, %v719
        %v721 = vpop.f32.mrf.mxu0
        %722 = vmatprep.mubr.bf16.mxu0 0
        %723 = vmatmul.mubr.bf16.gmra.mxu0 %v662
        %v724 = vpop.f32.mrf.mxu0
        %v725 = vadd.f32 %v603, %v724
        %v726 = vpop.f32.mrf.mxu0
        %v727 = vpop.f32.mrf.mxu0
        %v728 = vadd.f32 %v603, %v727
        %v729 = vpop.f32.mrf.mxu0
        %730 = vmatprep.mubr.bf16.mxu0 0
        %731 = vmatmul.mubr.bf16.gmra.mxu0 %v665
        %v732 = vpop.f32.mrf.mxu0
        %v733 = vadd.f32 %v603, %v732
        %v734 = vpop.f32.mrf.mxu0
        %v735 = vpop.f32.mrf.mxu0
        %v736 = vadd.f32 %v603, %v735
        %v737 = vpop.f32.mrf.mxu0
        %738 = vmatprep.mubr.bf16.mxu0 0
        %739 = vmatmul.mubr.bf16.gmra.mxu0 %v668
        %v740 = vpop.f32.mrf.mxu0
        %v741 = vadd.f32 %v603, %v740
        %v742 = vpop.f32.mrf.mxu0
        %v743 = vpop.f32.mrf.mxu0
        %v744 = vadd.f32 %v603, %v743
        %v745 = vpop.f32.mrf.mxu0
        %746 = vmatprep.mubr.bf16.mxu0 0
        %747 = vmatmul.mubr.bf16.gmra.mxu0 %v671
        %v748 = vpop.f32.mrf.mxu0
        %v749 = vadd.f32 %v603, %v748
        %v750 = vpop.f32.mrf.mxu0
        %v751 = vpop.f32.mrf.mxu0
        %v752 = vadd.f32 %v603, %v751
        %v753 = vpop.f32.mrf.mxu0
        %754 = vmatprep.mubr.bf16.mxu0 0
        %755 = vmatmul.mubr.bf16.gmra.mxu0 %v674
        %v756 = vpop.f32.mrf.mxu0
        %v757 = vadd.f32 %v603, %v756
        %v758 = vpop.f32.mrf.mxu0
        %v759 = vpop.f32.mrf.mxu0
        %v760 = vadd.f32 %v603, %v759
        %v761 = vpop.f32.mrf.mxu0
        %762 = vmatprep.mubr.bf16.mxu0 0
        %763 = vmatmul.mubr.bf16.gmra.mxu0 %v677
        %v764 = vpop.f32.mrf.mxu0
        %v765 = vadd.f32 %v603, %v764
        %v766 = vpop.f32.mrf.mxu0
        %v767 = vpop.f32.mrf.mxu0
        %v768 = vadd.f32 %v603, %v767
        %v769 = vpop.f32.mrf.mxu0
        %770 = vmatprep.mubr.bf16.mxu0 0
        %771 = vmatmul.mubr.bf16.gmra.mxu0 %v680
        %v772 = vpop.f32.mrf.mxu0
        %v773 = vadd.f32 %v603, %v772
        %v774 = vpop.f32.mrf.mxu0
        %v775 = vpop.f32.mrf.mxu0
        %v776 = vadd.f32 %v603, %v775
        %v777 = vpop.f32.mrf.mxu0
        %778 = vdwg.mxu0
        %v779 = vmax.f32 %v717, 0.0
        %v780 = vmax.f32 %v720, 0.0
        %v781 = vmax.f32 %v725, 0.0
        %v782 = vmax.f32 %v728, 0.0
        %v783 = vmax.f32 %v733, 0.0
        %v784 = vmax.f32 %v736, 0.0
        %v785 = vmax.f32 %v741, 0.0
        %v786 = vmax.f32 %v744, 0.0
        %v787 = vmax.f32 %v749, 0.0
        %v788 = vmax.f32 %v752, 0.0
        %v789 = vmax.f32 %v757, 0.0
        %v790 = vmax.f32 %v760, 0.0
        %v791 = vmax.f32 %v765, 0.0
        %v792 = vmax.f32 %v768, 0.0
        %v793 = vmax.f32 %v773, 0.0
        %v794 = vmax.f32 %v776, 0.0
        %v795 = vpack.c.bf16 %v780, %v779
        %v796 = vpack.c.bf16 %v782, %v781
        %v797 = vpack.c.bf16 %v784, %v783
        %v798 = vpack.c.bf16 %v786, %v785
        %v799 = vpack.c.bf16 %v788, %v787
        %v800 = vpack.c.bf16 %v790, %v789
        %v801 = vpack.c.bf16 %v792, %v791
        %v802 = vpack.c.bf16 %v794, %v793
        %v803 = vld [vmem:[%s3] sm:$0xf]
        %v804 = vld [vmem:[%s3 + $0x4] sm:$0xf]
        %v805 = vld [vmem:[%s3 + $0x8] sm:$0xf]
        %v806 = vld [vmem:[%s3 + $0xc] sm:$0xf]
        %v807 = vld [vmem:[%s3 + $0x10] sm:$0xf]
        %v808 = vld [vmem:[%s3 + $0x14] sm:$0xf]
        %v809 = vld [vmem:[%s3 + $0x18] sm:$0xf]
        %v810 = vld [vmem:[%s3 + $0x1c] sm:$0xf]
        %v811 = vld [vmem:[%s4] sm:$0x1]
        %v813 = vlaneseq
        %v814 = vshrl.u32 %v813, 7
        %v815 = vsub.s32 0, %v814
        %v816 = vrot.slane %v811, %v815
        %v826 = vunpack.c.l.b16 %v803
        %v827 = vunpack.c.l.b16 %v804
        %v828 = vunpack.c.l.b16 %v805
        %v829 = vunpack.c.l.b16 %v806
        %v830 = vunpack.c.l.b16 %v807
        %v831 = vunpack.c.l.b16 %v808
        %v832 = vunpack.c.l.b16 %v809
        %v833 = vunpack.c.l.b16 %v810
        %v834 = vpack.c.b16 %v827, %v826
        %v835 = vpack.c.b16 %v829, %v828
        %v836 = vpack.c.b16 %v831, %v830
        %v837 = vpack.c.b16 %v833, %v832
        %vm842 = vcmask 523264
        %v844 = vsel %vm842, %v795, 0
        %v847 = vsel %vm842, %v796, 0
        %v850 = vsel %vm842, %v797, 0
        %v853 = vsel %vm842, %v798, 0
        %v856 = vsel %vm842, %v799, 0
        %v859 = vsel %vm842, %v800, 0
        %v862 = vsel %vm842, %v801, 0
        %v865 = vsel %vm842, %v802, 0
        %867 = vmatprep.subr.bf16.mxu0 0
        %868 = vmatpush1.bf16.msra.mxu0 0
        %869 = vmatprep.subr.bf16.mxu0 0
        %870 = vmatpush1.bf16.msra.mxu0 0
        %871 = vmatprep.subr.bf16.mxu0 0
        %872 = vmatpush1.bf16.msra.mxu0 0
        %873 = vmatprep.subr.bf16.mxu0 0
        %874 = vmatpush1.bf16.msra.mxu0 0
        %875 = vmatprep.subr.bf16.mxu0 0
        %876 = vmatpush1.bf16.msra.mxu0 %v837
        %877 = vmatprep.subr.bf16.mxu0 0
        %878 = vmatpush1.bf16.msra.mxu0 %v836
        %879 = vmatprep.subr.bf16.mxu0 0
        %880 = vmatpush1.bf16.msra.mxu0 %v835
        %881 = vmatprep.subr.bf16.mxu0 0
        %882 = vmatpush1.bf16.msra.mxu0 %v834
        %883 = vmatprep.subr.bf16.mxu0 0
        %884 = vmatpush2.bf16.msra.mxu0 0
        %885 = vmatprep.subr.bf16.mxu0 0
        %886 = vmatpush2.bf16.msra.mxu0 0
        %887 = vmatprep.subr.bf16.mxu0 0
        %888 = vmatpush2.bf16.msra.mxu0 0
        %889 = vmatprep.subr.bf16.mxu0 0
        %890 = vmatpush2.bf16.msra.mxu0 0
        %891 = vmatprep.subr.bf16.mxu0 0
        %892 = vmatpush2.bf16.msra.mxu0 0
        %893 = vmatprep.subr.bf16.mxu0 0
        %894 = vmatpush2.bf16.msra.mxu0 0
        %895 = vmatprep.subr.bf16.mxu0 0
        %896 = vmatpush2.bf16.msra.mxu0 0
        %897 = vmatprep.subr.bf16.mxu0 0
        %898 = vmatpush2.bf16.msra.mxu0 0
        %899 = vmatprep.mubr.bf16.mxu0 0
        %900 = vmatmul.mubr.bf16.gmra.mxu0 %v844
        %v901 = vpop.f32.mrf.mxu0
        %v902 = vadd.f32 %v816, %v901
        %v903 = vpop.f32.mrf.mxu0
        %v904 = vpop.f32.mrf.mxu0
        %v905 = vadd.f32 %v816, %v904
        %v906 = vpop.f32.mrf.mxu0
        %907 = vmatprep.mubr.bf16.mxu0 0
        %908 = vmatmul.mubr.bf16.gmra.mxu0 %v847
        %v909 = vpop.f32.mrf.mxu0
        %v910 = vadd.f32 %v816, %v909
        %v911 = vpop.f32.mrf.mxu0
        %v912 = vpop.f32.mrf.mxu0
        %v913 = vadd.f32 %v816, %v912
        %v914 = vpop.f32.mrf.mxu0
        %915 = vmatprep.mubr.bf16.mxu0 0
        %916 = vmatmul.mubr.bf16.gmra.mxu0 %v850
        %v917 = vpop.f32.mrf.mxu0
        %v918 = vadd.f32 %v816, %v917
        %v919 = vpop.f32.mrf.mxu0
        %v920 = vpop.f32.mrf.mxu0
        %v921 = vadd.f32 %v816, %v920
        %v922 = vpop.f32.mrf.mxu0
        %923 = vmatprep.mubr.bf16.mxu0 0
        %924 = vmatmul.mubr.bf16.gmra.mxu0 %v853
        %v925 = vpop.f32.mrf.mxu0
        %v926 = vadd.f32 %v816, %v925
        %v927 = vpop.f32.mrf.mxu0
        %v928 = vpop.f32.mrf.mxu0
        %v929 = vadd.f32 %v816, %v928
        %v930 = vpop.f32.mrf.mxu0
        %931 = vmatprep.mubr.bf16.mxu0 0
        %932 = vmatmul.mubr.bf16.gmra.mxu0 %v856
        %v933 = vpop.f32.mrf.mxu0
        %v934 = vadd.f32 %v816, %v933
        %v935 = vpop.f32.mrf.mxu0
        %v936 = vpop.f32.mrf.mxu0
        %v937 = vadd.f32 %v816, %v936
        %v938 = vpop.f32.mrf.mxu0
        %939 = vmatprep.mubr.bf16.mxu0 0
        %940 = vmatmul.mubr.bf16.gmra.mxu0 %v859
        %v941 = vpop.f32.mrf.mxu0
        %v942 = vadd.f32 %v816, %v941
        %v943 = vpop.f32.mrf.mxu0
        %v944 = vpop.f32.mrf.mxu0
        %v945 = vadd.f32 %v816, %v944
        %v946 = vpop.f32.mrf.mxu0
        %947 = vmatprep.mubr.bf16.mxu0 0
        %948 = vmatmul.mubr.bf16.gmra.mxu0 %v862
        %v949 = vpop.f32.mrf.mxu0
        %v950 = vadd.f32 %v816, %v949
        %v951 = vpop.f32.mrf.mxu0
        %v952 = vpop.f32.mrf.mxu0
        %v953 = vadd.f32 %v816, %v952
        %v954 = vpop.f32.mrf.mxu0
        %955 = vmatprep.mubr.bf16.mxu0 0
        %956 = vmatmul.mubr.bf16.gmra.mxu0 %v865
        %v957 = vpop.f32.mrf.mxu0
        %v958 = vadd.f32 %v816, %v957
        %v959 = vpop.f32.mrf.mxu0
        %v960 = vpop.f32.mrf.mxu0
        %v961 = vadd.f32 %v816, %v960
        %v962 = vpop.f32.mrf.mxu0
        %963 = vdwg.mxu0
        %v964 = vmax.f32 %v902, 0.0
        %v965 = vmax.f32 %v905, 0.0
        %v966 = vmax.f32 %v910, 0.0
        %v967 = vmax.f32 %v913, 0.0
        %v968 = vmax.f32 %v918, 0.0
        %v969 = vmax.f32 %v921, 0.0
        %v970 = vmax.f32 %v926, 0.0
        %v971 = vmax.f32 %v929, 0.0
        %v972 = vmax.f32 %v934, 0.0
        %v973 = vmax.f32 %v937, 0.0
        %v974 = vmax.f32 %v942, 0.0
        %v975 = vmax.f32 %v945, 0.0
        %v976 = vmax.f32 %v950, 0.0
        %v977 = vmax.f32 %v953, 0.0
        %v978 = vmax.f32 %v958, 0.0
        %v979 = vmax.f32 %v961, 0.0
        %v980 = vpack.c.bf16 %v965, %v964
        %v981 = vpack.c.bf16 %v967, %v966
        %v982 = vpack.c.bf16 %v969, %v968
        %v983 = vpack.c.bf16 %v971, %v970
        %v984 = vpack.c.bf16 %v973, %v972
        %v985 = vpack.c.bf16 %v975, %v974
        %v986 = vpack.c.bf16 %v977, %v976
        %v987 = vpack.c.bf16 %v979, %v978
        %v988 = vld [vmem:[%s5] sm:$0xf]
        %v989 = vld [vmem:[%s5 + $0x4] sm:$0xf]
        %v990 = vld [vmem:[%s5 + $0x8] sm:$0xf]
        %v991 = vld [vmem:[%s5 + $0xc] sm:$0xf]
        %v992 = vld [vmem:[%s5 + $0x10] sm:$0xf]
        %v993 = vld [vmem:[%s5 + $0x14] sm:$0xf]
        %v994 = vld [vmem:[%s5 + $0x18] sm:$0xf]
        %v995 = vld [vmem:[%s5 + $0x1c] sm:$0xf]
        %v996 = vld [vmem:[%s6] sm:$0x1]
        %v998 = vlaneseq
        %v999 = vshrl.u32 %v998, 7
        %v1000 = vsub.s32 0, %v999
        %v1001 = vrot.slane %v996, %v1000
        %v1011 = vunpack.c.l.b16 %v988
        %v1012 = vunpack.c.l.b16 %v989
        %v1013 = vunpack.c.l.b16 %v990
        %v1014 = vunpack.c.l.b16 %v991
        %v1015 = vunpack.c.l.b16 %v992
        %v1016 = vunpack.c.l.b16 %v993
        %v1017 = vunpack.c.l.b16 %v994
        %v1018 = vunpack.c.l.b16 %v995
        %v1019 = vpack.c.b16 %v1012, %v1011
        %v1020 = vpack.c.b16 %v1014, %v1013
        %v1021 = vpack.c.b16 %v1016, %v1015
        %v1022 = vpack.c.b16 %v1018, %v1017
        %v1028 = vsel %vm842, %v980, 0
        %v1031 = vsel %vm842, %v981, 0
        %v1034 = vsel %vm842, %v982, 0
        %v1037 = vsel %vm842, %v983, 0
        %v1040 = vsel %vm842, %v984, 0
        %v1043 = vsel %vm842, %v985, 0
        %v1046 = vsel %vm842, %v986, 0
        %v1049 = vsel %vm842, %v987, 0
        %1051 = vmatprep.subr.bf16.mxu0 0
        %1052 = vmatpush1.bf16.msra.mxu0 0
        %1053 = vmatprep.subr.bf16.mxu0 0
        %1054 = vmatpush1.bf16.msra.mxu0 0
        %1055 = vmatprep.subr.bf16.mxu0 0
        %1056 = vmatpush1.bf16.msra.mxu0 0
        %1057 = vmatprep.subr.bf16.mxu0 0
        %1058 = vmatpush1.bf16.msra.mxu0 0
        %1059 = vmatprep.subr.bf16.mxu0 0
        %1060 = vmatpush1.bf16.msra.mxu0 %v1022
        %1061 = vmatprep.subr.bf16.mxu0 0
        %1062 = vmatpush1.bf16.msra.mxu0 %v1021
        %1063 = vmatprep.subr.bf16.mxu0 0
        %1064 = vmatpush1.bf16.msra.mxu0 %v1020
        %1065 = vmatprep.subr.bf16.mxu0 0
        %1066 = vmatpush1.bf16.msra.mxu0 %v1019
        %1067 = vmatprep.subr.bf16.mxu0 0
        %1068 = vmatpush2.bf16.msra.mxu0 0
        %1069 = vmatprep.subr.bf16.mxu0 0
        %1070 = vmatpush2.bf16.msra.mxu0 0
        %1071 = vmatprep.subr.bf16.mxu0 0
        %1072 = vmatpush2.bf16.msra.mxu0 0
        %1073 = vmatprep.subr.bf16.mxu0 0
        %1074 = vmatpush2.bf16.msra.mxu0 0
        %1075 = vmatprep.subr.bf16.mxu0 0
        %1076 = vmatpush2.bf16.msra.mxu0 0
        %1077 = vmatprep.subr.bf16.mxu0 0
        %1078 = vmatpush2.bf16.msra.mxu0 0
        %1079 = vmatprep.subr.bf16.mxu0 0
        %1080 = vmatpush2.bf16.msra.mxu0 0
        %1081 = vmatprep.subr.bf16.mxu0 0
        %1082 = vmatpush2.bf16.msra.mxu0 0
        %1083 = vmatprep.mubr.bf16.mxu0 0
        %1084 = vmatmul.mubr.bf16.gmra.mxu0 %v1028
        %v1085 = vpop.f32.mrf.mxu0
        %v1086 = vadd.f32 %v1001, %v1085
        %v1087 = vpop.f32.mrf.mxu0
        %v1088 = vpop.f32.mrf.mxu0
        %v1089 = vadd.f32 %v1001, %v1088
        %v1090 = vpop.f32.mrf.mxu0
        %1091 = vmatprep.mubr.bf16.mxu0 0
        %1092 = vmatmul.mubr.bf16.gmra.mxu0 %v1031
        %v1093 = vpop.f32.mrf.mxu0
        %v1094 = vadd.f32 %v1001, %v1093
        %v1095 = vpop.f32.mrf.mxu0
        %v1096 = vpop.f32.mrf.mxu0
        %v1097 = vadd.f32 %v1001, %v1096
        %v1098 = vpop.f32.mrf.mxu0
        %1099 = vmatprep.mubr.bf16.mxu0 0
        %1100 = vmatmul.mubr.bf16.gmra.mxu0 %v1034
        %v1101 = vpop.f32.mrf.mxu0
        %v1102 = vadd.f32 %v1001, %v1101
        %v1103 = vpop.f32.mrf.mxu0
        %v1104 = vpop.f32.mrf.mxu0
        %v1105 = vadd.f32 %v1001, %v1104
        %v1106 = vpop.f32.mrf.mxu0
        %1107 = vmatprep.mubr.bf16.mxu0 0
        %1108 = vmatmul.mubr.bf16.gmra.mxu0 %v1037
        %v1109 = vpop.f32.mrf.mxu0
        %v1110 = vadd.f32 %v1001, %v1109
        %v1111 = vpop.f32.mrf.mxu0
        %v1112 = vpop.f32.mrf.mxu0
        %v1113 = vadd.f32 %v1001, %v1112
        %v1114 = vpop.f32.mrf.mxu0
        %1115 = vmatprep.mubr.bf16.mxu0 0
        %1116 = vmatmul.mubr.bf16.gmra.mxu0 %v1040
        %v1117 = vpop.f32.mrf.mxu0
        %v1118 = vadd.f32 %v1001, %v1117
        %v1119 = vpop.f32.mrf.mxu0
        %v1120 = vpop.f32.mrf.mxu0
        %v1121 = vadd.f32 %v1001, %v1120
        %v1122 = vpop.f32.mrf.mxu0
        %1123 = vmatprep.mubr.bf16.mxu0 0
        %1124 = vmatmul.mubr.bf16.gmra.mxu0 %v1043
        %v1125 = vpop.f32.mrf.mxu0
        %v1126 = vadd.f32 %v1001, %v1125
        %v1127 = vpop.f32.mrf.mxu0
        %v1128 = vpop.f32.mrf.mxu0
        %v1129 = vadd.f32 %v1001, %v1128
        %v1130 = vpop.f32.mrf.mxu0
        %1131 = vmatprep.mubr.bf16.mxu0 0
        %1132 = vmatmul.mubr.bf16.gmra.mxu0 %v1046
        %v1133 = vpop.f32.mrf.mxu0
        %v1134 = vadd.f32 %v1001, %v1133
        %v1135 = vpop.f32.mrf.mxu0
        %v1136 = vpop.f32.mrf.mxu0
        %v1137 = vadd.f32 %v1001, %v1136
        %v1138 = vpop.f32.mrf.mxu0
        %1139 = vmatprep.mubr.bf16.mxu0 0
        %1140 = vmatmul.mubr.bf16.gmra.mxu0 %v1049
        %v1141 = vpop.f32.mrf.mxu0
        %v1142 = vadd.f32 %v1001, %v1141
        %v1143 = vpop.f32.mrf.mxu0
        %v1144 = vpop.f32.mrf.mxu0
        %v1145 = vadd.f32 %v1001, %v1144
        %v1146 = vpop.f32.mrf.mxu0
        %1147 = vdwg.mxu0
        %v1148 = vmax.f32 %v1086, 0.0
        %v1149 = vmax.f32 %v1089, 0.0
        %v1150 = vmax.f32 %v1094, 0.0
        %v1151 = vmax.f32 %v1097, 0.0
        %v1152 = vmax.f32 %v1102, 0.0
        %v1153 = vmax.f32 %v1105, 0.0
        %v1154 = vmax.f32 %v1110, 0.0
        %v1155 = vmax.f32 %v1113, 0.0
        %v1156 = vmax.f32 %v1118, 0.0
        %v1157 = vmax.f32 %v1121, 0.0
        %v1158 = vmax.f32 %v1126, 0.0
        %v1159 = vmax.f32 %v1129, 0.0
        %v1160 = vmax.f32 %v1134, 0.0
        %v1161 = vmax.f32 %v1137, 0.0
        %v1162 = vmax.f32 %v1142, 0.0
        %v1163 = vmax.f32 %v1145, 0.0
        %v1164 = vpack.c.bf16 %v1149, %v1148
        %v1165 = vpack.c.bf16 %v1151, %v1150
        %v1166 = vpack.c.bf16 %v1153, %v1152
        %v1167 = vpack.c.bf16 %v1155, %v1154
        %v1168 = vpack.c.bf16 %v1157, %v1156
        %v1169 = vpack.c.bf16 %v1159, %v1158
        %v1170 = vpack.c.bf16 %v1161, %v1160
        %v1171 = vpack.c.bf16 %v1163, %v1162
        %v1172 = vld [vmem:[%s7] sm:$0xf]
        %v1173 = vld [vmem:[%s7 + $0x4] sm:$0xf]
        %v1174 = vld [vmem:[%s7 + $0x8] sm:$0xf]
        %v1175 = vld [vmem:[%s7 + $0xc] sm:$0xf]
        %v1176 = vld [vmem:[%s7 + $0x10] sm:$0xf]
        %v1177 = vld [vmem:[%s7 + $0x14] sm:$0xf]
        %v1178 = vld [vmem:[%s7 + $0x18] sm:$0xf]
        %v1179 = vld [vmem:[%s7 + $0x1c] sm:$0xf]
        %v1180 = vld [vmem:[%s8] sm:$0x1]
        %v1182 = vlaneseq
        %v1183 = vshrl.u32 %v1182, 7
        %v1184 = vsub.s32 0, %v1183
        %v1185 = vrot.slane %v1180, %v1184
        %v1195 = vunpack.c.l.b16 %v1172
        %v1196 = vunpack.c.l.b16 %v1173
        %v1197 = vunpack.c.l.b16 %v1174
        %v1198 = vunpack.c.l.b16 %v1175
        %v1199 = vunpack.c.l.b16 %v1176
        %v1200 = vunpack.c.l.b16 %v1177
        %v1201 = vunpack.c.l.b16 %v1178
        %v1202 = vunpack.c.l.b16 %v1179
        %v1203 = vpack.c.b16 %v1196, %v1195
        %v1204 = vpack.c.b16 %v1198, %v1197
        %v1205 = vpack.c.b16 %v1200, %v1199
        %v1206 = vpack.c.b16 %v1202, %v1201
        %v1212 = vsel %vm842, %v1164, 0
        %v1215 = vsel %vm842, %v1165, 0
        %v1218 = vsel %vm842, %v1166, 0
        %v1221 = vsel %vm842, %v1167, 0
        %v1224 = vsel %vm842, %v1168, 0
        %v1227 = vsel %vm842, %v1169, 0
        %v1230 = vsel %vm842, %v1170, 0
        %v1233 = vsel %vm842, %v1171, 0
        %1235 = vmatprep.subr.bf16.mxu0 0
        %1236 = vmatpush1.bf16.msra.mxu0 0
        %1237 = vmatprep.subr.bf16.mxu0 0
        %1238 = vmatpush1.bf16.msra.mxu0 0
        %1239 = vmatprep.subr.bf16.mxu0 0
        %1240 = vmatpush1.bf16.msra.mxu0 0
        %1241 = vmatprep.subr.bf16.mxu0 0
        %1242 = vmatpush1.bf16.msra.mxu0 0
        %1243 = vmatprep.subr.bf16.mxu0 0
        %1244 = vmatpush1.bf16.msra.mxu0 %v1206
        %1245 = vmatprep.subr.bf16.mxu0 0
        %1246 = vmatpush1.bf16.msra.mxu0 %v1205
        %1247 = vmatprep.subr.bf16.mxu0 0
        %1248 = vmatpush1.bf16.msra.mxu0 %v1204
        %1249 = vmatprep.subr.bf16.mxu0 0
        %1250 = vmatpush1.bf16.msra.mxu0 %v1203
        %1251 = vmatprep.subr.bf16.mxu0 0
        %1252 = vmatpush2.bf16.msra.mxu0 0
        %1253 = vmatprep.subr.bf16.mxu0 0
        %1254 = vmatpush2.bf16.msra.mxu0 0
        %1255 = vmatprep.subr.bf16.mxu0 0
        %1256 = vmatpush2.bf16.msra.mxu0 0
        %1257 = vmatprep.subr.bf16.mxu0 0
        %1258 = vmatpush2.bf16.msra.mxu0 0
        %1259 = vmatprep.subr.bf16.mxu0 0
        %1260 = vmatpush2.bf16.msra.mxu0 0
        %1261 = vmatprep.subr.bf16.mxu0 0
        %1262 = vmatpush2.bf16.msra.mxu0 0
        %1263 = vmatprep.subr.bf16.mxu0 0
        %1264 = vmatpush2.bf16.msra.mxu0 0
        %1265 = vmatprep.subr.bf16.mxu0 0
        %1266 = vmatpush2.bf16.msra.mxu0 0
        %1267 = vmatprep.mubr.bf16.mxu0 0
        %1268 = vmatmul.mubr.bf16.gmra.mxu0 %v1212
        %v1269 = vpop.f32.mrf.mxu0
        %v1270 = vadd.f32 %v1185, %v1269
        %v1271 = vpop.f32.mrf.mxu0
        %v1272 = vpop.f32.mrf.mxu0
        %v1273 = vadd.f32 %v1185, %v1272
        %v1274 = vpop.f32.mrf.mxu0
        %1275 = vmatprep.mubr.bf16.mxu0 0
        %1276 = vmatmul.mubr.bf16.gmra.mxu0 %v1215
        %v1277 = vpop.f32.mrf.mxu0
        %v1278 = vadd.f32 %v1185, %v1277
        %v1279 = vpop.f32.mrf.mxu0
        %v1280 = vpop.f32.mrf.mxu0
        %v1281 = vadd.f32 %v1185, %v1280
        %v1282 = vpop.f32.mrf.mxu0
        %1283 = vmatprep.mubr.bf16.mxu0 0
        %1284 = vmatmul.mubr.bf16.gmra.mxu0 %v1218
        %v1285 = vpop.f32.mrf.mxu0
        %v1286 = vadd.f32 %v1185, %v1285
        %v1287 = vpop.f32.mrf.mxu0
        %v1288 = vpop.f32.mrf.mxu0
        %v1289 = vadd.f32 %v1185, %v1288
        %v1290 = vpop.f32.mrf.mxu0
        %1291 = vmatprep.mubr.bf16.mxu0 0
        %1292 = vmatmul.mubr.bf16.gmra.mxu0 %v1221
        %v1293 = vpop.f32.mrf.mxu0
        %v1294 = vadd.f32 %v1185, %v1293
        %v1295 = vpop.f32.mrf.mxu0
        %v1296 = vpop.f32.mrf.mxu0
        %v1297 = vadd.f32 %v1185, %v1296
        %v1298 = vpop.f32.mrf.mxu0
        %1299 = vmatprep.mubr.bf16.mxu0 0
        %1300 = vmatmul.mubr.bf16.gmra.mxu0 %v1224
        %v1301 = vpop.f32.mrf.mxu0
        %v1302 = vadd.f32 %v1185, %v1301
        %v1303 = vpop.f32.mrf.mxu0
        %v1304 = vpop.f32.mrf.mxu0
        %v1305 = vadd.f32 %v1185, %v1304
        %v1306 = vpop.f32.mrf.mxu0
        %1307 = vmatprep.mubr.bf16.mxu0 0
        %1308 = vmatmul.mubr.bf16.gmra.mxu0 %v1227
        %v1309 = vpop.f32.mrf.mxu0
        %v1310 = vadd.f32 %v1185, %v1309
        %v1311 = vpop.f32.mrf.mxu0
        %v1312 = vpop.f32.mrf.mxu0
        %v1313 = vadd.f32 %v1185, %v1312
        %v1314 = vpop.f32.mrf.mxu0
        %1315 = vmatprep.mubr.bf16.mxu0 0
        %1316 = vmatmul.mubr.bf16.gmra.mxu0 %v1230
        %v1317 = vpop.f32.mrf.mxu0
        %v1318 = vadd.f32 %v1185, %v1317
        %v1319 = vpop.f32.mrf.mxu0
        %v1320 = vpop.f32.mrf.mxu0
        %v1321 = vadd.f32 %v1185, %v1320
        %v1322 = vpop.f32.mrf.mxu0
        %1323 = vmatprep.mubr.bf16.mxu0 0
        %1324 = vmatmul.mubr.bf16.gmra.mxu0 %v1233
        %v1325 = vpop.f32.mrf.mxu0
        %v1326 = vadd.f32 %v1185, %v1325
        %v1327 = vpop.f32.mrf.mxu0
        %v1328 = vpop.f32.mrf.mxu0
        %v1329 = vadd.f32 %v1185, %v1328
        %v1330 = vpop.f32.mrf.mxu0
        %1331 = vdwg.mxu0
        %v1332 = vmax.f32 %v1270, 0.0
        %v1333 = vmax.f32 %v1273, 0.0
        %v1334 = vmax.f32 %v1278, 0.0
        %v1335 = vmax.f32 %v1281, 0.0
        %v1336 = vmax.f32 %v1286, 0.0
        %v1337 = vmax.f32 %v1289, 0.0
        %v1338 = vmax.f32 %v1294, 0.0
        %v1339 = vmax.f32 %v1297, 0.0
        %v1340 = vmax.f32 %v1302, 0.0
        %v1341 = vmax.f32 %v1305, 0.0
        %v1342 = vmax.f32 %v1310, 0.0
        %v1343 = vmax.f32 %v1313, 0.0
        %v1344 = vmax.f32 %v1318, 0.0
        %v1345 = vmax.f32 %v1321, 0.0
        %v1346 = vmax.f32 %v1326, 0.0
        %v1347 = vmax.f32 %v1329, 0.0
        %v1348 = vpack.c.bf16 %v1333, %v1332
        %v1349 = vpack.c.bf16 %v1335, %v1334
        %v1350 = vpack.c.bf16 %v1337, %v1336
        %v1351 = vpack.c.bf16 %v1339, %v1338
        %v1352 = vpack.c.bf16 %v1341, %v1340
        %v1353 = vpack.c.bf16 %v1343, %v1342
        %v1354 = vpack.c.bf16 %v1345, %v1344
        %v1355 = vpack.c.bf16 %v1347, %v1346
        %v1356 = vld [vmem:[%s9] sm:$0xf]
        %v1357 = vld [vmem:[%s9 + $0x4] sm:$0xf]
        %v1358 = vld [vmem:[%s9 + $0x8] sm:$0xf]
        %v1359 = vld [vmem:[%s9 + $0xc] sm:$0xf]
        %v1360 = vld [vmem:[%s9 + $0x10] sm:$0x1]
        %v1361 = vld [vmem:[%s10] sm:$0xf]
        %v1362 = vld [vmem:[%s10 + $0x4] sm:$0xf]
        %v1363 = vld [vmem:[%s10 + $0x8] sm:$0xf]
        %v1364 = vld [vmem:[%s10 + $0xc] sm:$0xf]
        %v1369 = vunpack.c.l.b16 %v1361
        %v1370 = vunpack.c.l.b16 %v1362
        %v1371 = vunpack.c.l.b16 %v1363
        %v1372 = vunpack.c.l.b16 %v1364
        %v1373 = vpack.c.b16 %v1370, %v1369
        %v1374 = vpack.c.b16 %v1372, %v1371
        %1377 = vmatprep.subr.bf16.mxu0 0
        %1378 = vmatpush1.bf16.msra.mxu0 0
        %1379 = vmatprep.subr.bf16.mxu0 0
        %1380 = vmatpush1.bf16.msra.mxu0 0
        %1381 = vmatprep.subr.bf16.mxu0 0
        %1382 = vmatpush1.bf16.msra.mxu0 0
        %1383 = vmatprep.subr.bf16.mxu0 0
        %1384 = vmatpush1.bf16.msra.mxu0 0
        %1385 = vmatprep.subr.bf16.mxu0 0
        %1386 = vmatpush1.bf16.msra.mxu0 0
        %1387 = vmatprep.subr.bf16.mxu0 0
        %1388 = vmatpush1.bf16.msra.mxu0 0
        %1389 = vmatprep.subr.bf16.mxu0 0
        %1390 = vmatpush1.bf16.msra.mxu0 %v1374
        %1391 = vmatprep.subr.bf16.mxu0 0
        %1392 = vmatpush1.bf16.msra.mxu0 %v1373
        %1393 = vmatprep.subr.bf16.mxu0 0
        %1394 = vmatpush2.bf16.msra.mxu0 0
        %1395 = vmatprep.subr.bf16.mxu0 0
        %1396 = vmatpush2.bf16.msra.mxu0 0
        %1397 = vmatprep.subr.bf16.mxu0 0
        %1398 = vmatpush2.bf16.msra.mxu0 0
        %1399 = vmatprep.subr.bf16.mxu0 0
        %1400 = vmatpush2.bf16.msra.mxu0 0
        %1401 = vmatprep.subr.bf16.mxu0 0
        %1402 = vmatpush2.bf16.msra.mxu0 0
        %1403 = vmatprep.subr.bf16.mxu0 0
        %1404 = vmatpush2.bf16.msra.mxu0 0
        %1405 = vmatprep.subr.bf16.mxu0 0
        %1406 = vmatpush2.bf16.msra.mxu0 0
        %1407 = vmatprep.subr.bf16.mxu0 0
        %1408 = vmatpush2.bf16.msra.mxu0 0
        %1409 = vmatprep.mubr.bf16.mxu0 0
        %1410 = vmatmul.mubr.bf16.gmra.mxu0 %v659
        %v1411 = vpop.f32.mrf.mxu0
        %v1412 = vadd.f32 0.0, %v1411
        %v1413 = vpop.f32.mrf.mxu0
        %v1414 = vpop.f32.mrf.mxu0
        %v1415 = vadd.f32 0.0, %v1414
        %v1416 = vpop.f32.mrf.mxu0
        %1417 = vmatprep.mubr.bf16.mxu0 0
        %1418 = vmatmul.mubr.bf16.gmra.mxu0 %v662
        %v1419 = vpop.f32.mrf.mxu0
        %v1420 = vadd.f32 0.0, %v1419
        %v1421 = vpop.f32.mrf.mxu0
        %v1422 = vpop.f32.mrf.mxu0
        %v1423 = vadd.f32 0.0, %v1422
        %v1424 = vpop.f32.mrf.mxu0
        %1425 = vmatprep.mubr.bf16.mxu0 0
        %1426 = vmatmul.mubr.bf16.gmra.mxu0 %v665
        %v1427 = vpop.f32.mrf.mxu0
        %v1428 = vadd.f32 0.0, %v1427
        %v1429 = vpop.f32.mrf.mxu0
        %v1430 = vpop.f32.mrf.mxu0
        %v1431 = vadd.f32 0.0, %v1430
        %v1432 = vpop.f32.mrf.mxu0
        %1433 = vmatprep.mubr.bf16.mxu0 0
        %1434 = vmatmul.mubr.bf16.gmra.mxu0 %v668
        %v1435 = vpop.f32.mrf.mxu0
        %v1436 = vadd.f32 0.0, %v1435
        %v1437 = vpop.f32.mrf.mxu0
        %v1438 = vpop.f32.mrf.mxu0
        %v1439 = vadd.f32 0.0, %v1438
        %v1440 = vpop.f32.mrf.mxu0
        %1441 = vmatprep.mubr.bf16.mxu0 0
        %1442 = vmatmul.mubr.bf16.gmra.mxu0 %v671
        %v1443 = vpop.f32.mrf.mxu0
        %v1444 = vadd.f32 0.0, %v1443
        %v1445 = vpop.f32.mrf.mxu0
        %v1446 = vpop.f32.mrf.mxu0
        %v1447 = vadd.f32 0.0, %v1446
        %v1448 = vpop.f32.mrf.mxu0
        %1449 = vmatprep.mubr.bf16.mxu0 0
        %1450 = vmatmul.mubr.bf16.gmra.mxu0 %v674
        %v1451 = vpop.f32.mrf.mxu0
        %v1452 = vadd.f32 0.0, %v1451
        %v1453 = vpop.f32.mrf.mxu0
        %v1454 = vpop.f32.mrf.mxu0
        %v1455 = vadd.f32 0.0, %v1454
        %v1456 = vpop.f32.mrf.mxu0
        %1457 = vmatprep.mubr.bf16.mxu0 0
        %1458 = vmatmul.mubr.bf16.gmra.mxu0 %v677
        %v1459 = vpop.f32.mrf.mxu0
        %v1460 = vadd.f32 0.0, %v1459
        %v1461 = vpop.f32.mrf.mxu0
        %v1462 = vpop.f32.mrf.mxu0
        %v1463 = vadd.f32 0.0, %v1462
        %v1464 = vpop.f32.mrf.mxu0
        %1465 = vmatprep.mubr.bf16.mxu0 0
        %1466 = vmatmul.mubr.bf16.gmra.mxu0 %v680
        %v1467 = vpop.f32.mrf.mxu0
        %v1468 = vadd.f32 0.0, %v1467
        %v1469 = vpop.f32.mrf.mxu0
        %v1470 = vpop.f32.mrf.mxu0
        %v1471 = vadd.f32 0.0, %v1470
        %v1472 = vpop.f32.mrf.mxu0
        %1473 = vdwg.mxu0
        %v1479 = vunpack.c.l.b16 %v1356
        %v1480 = vunpack.c.l.b16 %v1357
        %v1481 = vunpack.c.l.b16 %v1358
        %v1482 = vunpack.c.l.b16 %v1359
        %v1483 = vunpack.c.l.b16 %v1360
        %v1484 = vpack.c.b16 %v1480, %v1479
        %v1485 = vpack.c.b16 %v1482, %v1481
        %v1486 = vpack.c.b16 %v1483, %v1483
        %vm1489 = vcmask 269312
        %v1491 = vsel %vm1489, %v1348, 0
        %v1494 = vsel %vm1489, %v1349, 0
        %v1497 = vsel %vm1489, %v1350, 0
        %v1500 = vsel %vm1489, %v1351, 0
        %v1503 = vsel %vm1489, %v1352, 0
        %v1506 = vsel %vm1489, %v1353, 0
        %v1509 = vsel %vm1489, %v1354, 0
        %v1512 = vsel %vm1489, %v1355, 0
        %vm1514 = vcmask 1040384
        %v1515 = vsel 0, 4294967295, 65535
        %v1516 = vsel %vm1514, %v1515, 0
        %v1518 = vand.u32 %v1486, %v1516
        %1520 = vmatprep.subr.bf16.mxu0 0
        %1521 = vmatpush1.bf16.msra.mxu0 0
        %1522 = vmatprep.subr.bf16.mxu0 0
        %1523 = vmatpush1.bf16.msra.mxu0 0
        %1524 = vmatprep.subr.bf16.mxu0 0
        %1525 = vmatpush1.bf16.msra.mxu0 0
        %1526 = vmatprep.subr.bf16.mxu0 0
        %1527 = vmatpush1.bf16.msra.mxu0 0
        %1528 = vmatprep.subr.bf16.mxu0 0
        %1529 = vmatpush1.bf16.msra.mxu0 0
        %1530 = vmatprep.subr.bf16.mxu0 0
        %1531 = vmatpush1.bf16.msra.mxu0 %v1518
        %1532 = vmatprep.subr.bf16.mxu0 0
        %1533 = vmatpush1.bf16.msra.mxu0 %v1485
        %1534 = vmatprep.subr.bf16.mxu0 0
        %1535 = vmatpush1.bf16.msra.mxu0 %v1484
        %1536 = vmatprep.subr.bf16.mxu0 0
        %1537 = vmatpush2.bf16.msra.mxu0 0
        %1538 = vmatprep.subr.bf16.mxu0 0
        %1539 = vmatpush2.bf16.msra.mxu0 0
        %1540 = vmatprep.subr.bf16.mxu0 0
        %1541 = vmatpush2.bf16.msra.mxu0 0
        %1542 = vmatprep.subr.bf16.mxu0 0
        %1543 = vmatpush2.bf16.msra.mxu0 0
        %1544 = vmatprep.subr.bf16.mxu0 0
        %1545 = vmatpush2.bf16.msra.mxu0 0
        %1546 = vmatprep.subr.bf16.mxu0 0
        %1547 = vmatpush2.bf16.msra.mxu0 0
        %1548 = vmatprep.subr.bf16.mxu0 0
        %1549 = vmatpush2.bf16.msra.mxu0 0
        %1550 = vmatprep.subr.bf16.mxu0 0
        %1551 = vmatpush2.bf16.msra.mxu0 0
        %1552 = vmatprep.mubr.bf16.mxu0 0
        %1553 = vmatmul.mubr.bf16.gmra.mxu0 %v1491
        %v1554 = vpop.f32.mrf.mxu0
        %v1555 = vadd.f32 %v1412, %v1554
        %v1556 = vpop.f32.mrf.mxu0
        %v1557 = vpop.f32.mrf.mxu0
        %v1558 = vadd.f32 %v1415, %v1557
        %v1559 = vpop.f32.mrf.mxu0
        %1560 = vmatprep.mubr.bf16.mxu0 0
        %1561 = vmatmul.mubr.bf16.gmra.mxu0 %v1494
        %v1562 = vpop.f32.mrf.mxu0
        %v1563 = vadd.f32 %v1420, %v1562
        %v1564 = vpop.f32.mrf.mxu0
        %v1565 = vpop.f32.mrf.mxu0
        %v1566 = vadd.f32 %v1423, %v1565
        %v1567 = vpop.f32.mrf.mxu0
        %1568 = vmatprep.mubr.bf16.mxu0 0
        %1569 = vmatmul.mubr.bf16.gmra.mxu0 %v1497
        %v1570 = vpop.f32.mrf.mxu0
        %v1571 = vadd.f32 %v1428, %v1570
        %v1572 = vpop.f32.mrf.mxu0
        %v1573 = vpop.f32.mrf.mxu0
        %v1574 = vadd.f32 %v1431, %v1573
        %v1575 = vpop.f32.mrf.mxu0
        %1576 = vmatprep.mubr.bf16.mxu0 0
        %1577 = vmatmul.mubr.bf16.gmra.mxu0 %v1500
        %v1578 = vpop.f32.mrf.mxu0
        %v1579 = vadd.f32 %v1436, %v1578
        %v1580 = vpop.f32.mrf.mxu0
        %v1581 = vpop.f32.mrf.mxu0
        %v1582 = vadd.f32 %v1439, %v1581
        %v1583 = vpop.f32.mrf.mxu0
        %1584 = vmatprep.mubr.bf16.mxu0 0
        %1585 = vmatmul.mubr.bf16.gmra.mxu0 %v1503
        %v1586 = vpop.f32.mrf.mxu0
        %v1587 = vadd.f32 %v1444, %v1586
        %v1588 = vpop.f32.mrf.mxu0
        %v1589 = vpop.f32.mrf.mxu0
        %v1590 = vadd.f32 %v1447, %v1589
        %v1591 = vpop.f32.mrf.mxu0
        %1592 = vmatprep.mubr.bf16.mxu0 0
        %1593 = vmatmul.mubr.bf16.gmra.mxu0 %v1506
        %v1594 = vpop.f32.mrf.mxu0
        %v1595 = vadd.f32 %v1452, %v1594
        %v1596 = vpop.f32.mrf.mxu0
        %v1597 = vpop.f32.mrf.mxu0
        %v1598 = vadd.f32 %v1455, %v1597
        %v1599 = vpop.f32.mrf.mxu0
        %1600 = vmatprep.mubr.bf16.mxu0 0
        %1601 = vmatmul.mubr.bf16.gmra.mxu0 %v1509
        %v1602 = vpop.f32.mrf.mxu0
        %v1603 = vadd.f32 %v1460, %v1602
        %v1604 = vpop.f32.mrf.mxu0
        %v1605 = vpop.f32.mrf.mxu0
        %v1606 = vadd.f32 %v1463, %v1605
        %v1607 = vpop.f32.mrf.mxu0
        %1608 = vmatprep.mubr.bf16.mxu0 0
        %1609 = vmatmul.mubr.bf16.gmra.mxu0 %v1512
        %v1610 = vpop.f32.mrf.mxu0
        %v1611 = vadd.f32 %v1468, %v1610
        %v1612 = vpop.f32.mrf.mxu0
        %v1613 = vpop.f32.mrf.mxu0
        %v1614 = vadd.f32 %v1471, %v1613
        %v1615 = vpop.f32.mrf.mxu0
        %1616 = vdwg.mxu0
        %v1617 = vld [vmem:[%s11] sm:$0x1]
        %v1619 = vlaneseq
        %v1620 = vshrl.u32 %v1619, 7
        %v1621 = vsub.s32 0, %v1620
        %v1622 = vrot.slane %v1617, %v1621
        %v1624 = vadd.f32 %v1555, %v1622
        %v1625 = vadd.f32 %v1558, %v1622
        %v1626 = vadd.f32 %v1563, %v1622
        %v1627 = vadd.f32 %v1566, %v1622
        %v1628 = vadd.f32 %v1571, %v1622
        %v1629 = vadd.f32 %v1574, %v1622
        %v1630 = vadd.f32 %v1579, %v1622
        %v1631 = vadd.f32 %v1582, %v1622
        %v1632 = vadd.f32 %v1587, %v1622
        %v1633 = vadd.f32 %v1590, %v1622
        %v1634 = vadd.f32 %v1595, %v1622
        %v1635 = vadd.f32 %v1598, %v1622
        %v1636 = vadd.f32 %v1603, %v1622
        %v1637 = vadd.f32 %v1606, %v1622
        %v1638 = vadd.f32 %v1611, %v1622
        %v1639 = vadd.f32 %v1614, %v1622
        %v1640 = vmax.f32 %v1624, 0.0
        %v1641 = vmax.f32 %v1625, 0.0
        %v1642 = vmax.f32 %v1626, 0.0
        %v1643 = vmax.f32 %v1627, 0.0
        %v1644 = vmax.f32 %v1628, 0.0
        %v1645 = vmax.f32 %v1629, 0.0
        %v1646 = vmax.f32 %v1630, 0.0
        %v1647 = vmax.f32 %v1631, 0.0
        %v1648 = vmax.f32 %v1632, 0.0
        %v1649 = vmax.f32 %v1633, 0.0
        %v1650 = vmax.f32 %v1634, 0.0
        %v1651 = vmax.f32 %v1635, 0.0
        %v1652 = vmax.f32 %v1636, 0.0
        %v1653 = vmax.f32 %v1637, 0.0
        %v1654 = vmax.f32 %v1638, 0.0
        %v1655 = vmax.f32 %v1639, 0.0
        %v1656 = vpack.c.bf16 %v1641, %v1640
        %v1657 = vpack.c.bf16 %v1643, %v1642
        %v1658 = vpack.c.bf16 %v1645, %v1644
        %v1659 = vpack.c.bf16 %v1647, %v1646
        %v1660 = vpack.c.bf16 %v1649, %v1648
        %v1661 = vpack.c.bf16 %v1651, %v1650
        %v1662 = vpack.c.bf16 %v1653, %v1652
        %v1663 = vpack.c.bf16 %v1655, %v1654
        %v1664 = vld [vmem:[%s12] sm:$0xf]
        %v1665 = vld [vmem:[%s12 + $0x4] sm:$0xf]
        %v1666 = vld [vmem:[%s12 + $0x8] sm:$0xf]
        %v1667 = vld [vmem:[%s12 + $0xc] sm:$0xf]
        %v1668 = vld [vmem:[%s12 + $0x10] sm:$0xf]
        %v1669 = vld [vmem:[%s12 + $0x14] sm:$0xf]
        %v1670 = vld [vmem:[%s12 + $0x18] sm:$0xf]
        %v1671 = vld [vmem:[%s12 + $0x1c] sm:$0xf]
        %v1672 = vld [vmem:[%s13] sm:$0x1]
        %v1674 = vlaneseq
        %v1675 = vshrl.u32 %v1674, 7
        %v1676 = vsub.s32 0, %v1675
        %v1677 = vrot.slane %v1672, %v1676
        %v1687 = vunpack.c.l.b16 %v1664
        %v1688 = vunpack.c.l.b16 %v1665
        %v1689 = vunpack.c.l.b16 %v1666
        %v1690 = vunpack.c.l.b16 %v1667
        %v1691 = vunpack.c.l.b16 %v1668
        %v1692 = vunpack.c.l.b16 %v1669
        %v1693 = vunpack.c.l.b16 %v1670
        %v1694 = vunpack.c.l.b16 %v1671
        %v1695 = vpack.c.b16 %v1688, %v1687
        %v1696 = vpack.c.b16 %v1690, %v1689
        %v1697 = vpack.c.b16 %v1692, %v1691
        %v1698 = vpack.c.b16 %v1694, %v1693
        %v1704 = vsel %vm842, %v1656, 0
        %v1707 = vsel %vm842, %v1657, 0
        %v1710 = vsel %vm842, %v1658, 0
        %v1713 = vsel %vm842, %v1659, 0
        %v1716 = vsel %vm842, %v1660, 0
        %v1719 = vsel %vm842, %v1661, 0
        %v1722 = vsel %vm842, %v1662, 0
        %v1725 = vsel %vm842, %v1663, 0
        %1727 = vmatprep.subr.bf16.mxu0 0
        %1728 = vmatpush1.bf16.msra.mxu0 0
        %1729 = vmatprep.subr.bf16.mxu0 0
        %1730 = vmatpush1.bf16.msra.mxu0 0
        %1731 = vmatprep.subr.bf16.mxu0 0
        %1732 = vmatpush1.bf16.msra.mxu0 0
        %1733 = vmatprep.subr.bf16.mxu0 0
        %1734 = vmatpush1.bf16.msra.mxu0 0
        %1735 = vmatprep.subr.bf16.mxu0 0
        %1736 = vmatpush1.bf16.msra.mxu0 %v1698
        %1737 = vmatprep.subr.bf16.mxu0 0
        %1738 = vmatpush1.bf16.msra.mxu0 %v1697
        %1739 = vmatprep.subr.bf16.mxu0 0
        %1740 = vmatpush1.bf16.msra.mxu0 %v1696
        %1741 = vmatprep.subr.bf16.mxu0 0
        %1742 = vmatpush1.bf16.msra.mxu0 %v1695
        %1743 = vmatprep.subr.bf16.mxu0 0
        %1744 = vmatpush2.bf16.msra.mxu0 0
        %1745 = vmatprep.subr.bf16.mxu0 0
        %1746 = vmatpush2.bf16.msra.mxu0 0
        %1747 = vmatprep.subr.bf16.mxu0 0
        %1748 = vmatpush2.bf16.msra.mxu0 0
        %1749 = vmatprep.subr.bf16.mxu0 0
        %1750 = vmatpush2.bf16.msra.mxu0 0
        %1751 = vmatprep.subr.bf16.mxu0 0
        %1752 = vmatpush2.bf16.msra.mxu0 0
        %1753 = vmatprep.subr.bf16.mxu0 0
        %1754 = vmatpush2.bf16.msra.mxu0 0
        %1755 = vmatprep.subr.bf16.mxu0 0
        %1756 = vmatpush2.bf16.msra.mxu0 0
        %1757 = vmatprep.subr.bf16.mxu0 0
        %1758 = vmatpush2.bf16.msra.mxu0 0
        %1759 = vmatprep.mubr.bf16.mxu0 0
        %1760 = vmatmul.mubr.bf16.gmra.mxu0 %v1704
        %v1761 = vpop.f32.mrf.mxu0
        %v1762 = vadd.f32 %v1677, %v1761
        %v1763 = vpop.f32.mrf.mxu0
        %v1764 = vpop.f32.mrf.mxu0
        %v1765 = vadd.f32 %v1677, %v1764
        %v1766 = vpop.f32.mrf.mxu0
        %1767 = vmatprep.mubr.bf16.mxu0 0
        %1768 = vmatmul.mubr.bf16.gmra.mxu0 %v1707
        %v1769 = vpop.f32.mrf.mxu0
        %v1770 = vadd.f32 %v1677, %v1769
        %v1771 = vpop.f32.mrf.mxu0
        %v1772 = vpop.f32.mrf.mxu0
        %v1773 = vadd.f32 %v1677, %v1772
        %v1774 = vpop.f32.mrf.mxu0
        %1775 = vmatprep.mubr.bf16.mxu0 0
        %1776 = vmatmul.mubr.bf16.gmra.mxu0 %v1710
        %v1777 = vpop.f32.mrf.mxu0
        %v1778 = vadd.f32 %v1677, %v1777
        %v1779 = vpop.f32.mrf.mxu0
        %v1780 = vpop.f32.mrf.mxu0
        %v1781 = vadd.f32 %v1677, %v1780
        %v1782 = vpop.f32.mrf.mxu0
        %1783 = vmatprep.mubr.bf16.mxu0 0
        %1784 = vmatmul.mubr.bf16.gmra.mxu0 %v1713
        %v1785 = vpop.f32.mrf.mxu0
        %v1786 = vadd.f32 %v1677, %v1785
        %v1787 = vpop.f32.mrf.mxu0
        %v1788 = vpop.f32.mrf.mxu0
        %v1789 = vadd.f32 %v1677, %v1788
        %v1790 = vpop.f32.mrf.mxu0
        %1791 = vmatprep.mubr.bf16.mxu0 0
        %1792 = vmatmul.mubr.bf16.gmra.mxu0 %v1716
        %v1793 = vpop.f32.mrf.mxu0
        %v1794 = vadd.f32 %v1677, %v1793
        %v1795 = vpop.f32.mrf.mxu0
        %v1796 = vpop.f32.mrf.mxu0
        %v1797 = vadd.f32 %v1677, %v1796
        %v1798 = vpop.f32.mrf.mxu0
        %1799 = vmatprep.mubr.bf16.mxu0 0
        %1800 = vmatmul.mubr.bf16.gmra.mxu0 %v1719
        %v1801 = vpop.f32.mrf.mxu0
        %v1802 = vadd.f32 %v1677, %v1801
        %v1803 = vpop.f32.mrf.mxu0
        %v1804 = vpop.f32.mrf.mxu0
        %v1805 = vadd.f32 %v1677, %v1804
        %v1806 = vpop.f32.mrf.mxu0
        %1807 = vmatprep.mubr.bf16.mxu0 0
        %1808 = vmatmul.mubr.bf16.gmra.mxu0 %v1722
        %v1809 = vpop.f32.mrf.mxu0
        %v1810 = vadd.f32 %v1677, %v1809
        %v1811 = vpop.f32.mrf.mxu0
        %v1812 = vpop.f32.mrf.mxu0
        %v1813 = vadd.f32 %v1677, %v1812
        %v1814 = vpop.f32.mrf.mxu0
        %1815 = vmatprep.mubr.bf16.mxu0 0
        %1816 = vmatmul.mubr.bf16.gmra.mxu0 %v1725
        %v1817 = vpop.f32.mrf.mxu0
        %v1818 = vadd.f32 %v1677, %v1817
        %v1819 = vpop.f32.mrf.mxu0
        %v1820 = vpop.f32.mrf.mxu0
        %v1821 = vadd.f32 %v1677, %v1820
        %v1822 = vpop.f32.mrf.mxu0
        %1823 = vdwg.mxu0
        %v1824 = vmax.f32 %v1762, 0.0
        %v1825 = vmax.f32 %v1765, 0.0
        %v1826 = vmax.f32 %v1770, 0.0
        %v1827 = vmax.f32 %v1773, 0.0
        %v1828 = vmax.f32 %v1778, 0.0
        %v1829 = vmax.f32 %v1781, 0.0
        %v1830 = vmax.f32 %v1786, 0.0
        %v1831 = vmax.f32 %v1789, 0.0
        %v1832 = vmax.f32 %v1794, 0.0
        %v1833 = vmax.f32 %v1797, 0.0
        %v1834 = vmax.f32 %v1802, 0.0
        %v1835 = vmax.f32 %v1805, 0.0
        %v1836 = vmax.f32 %v1810, 0.0
        %v1837 = vmax.f32 %v1813, 0.0
        %v1838 = vmax.f32 %v1818, 0.0
        %v1839 = vmax.f32 %v1821, 0.0
        %v1840 = vpack.c.bf16 %v1825, %v1824
        %v1841 = vpack.c.bf16 %v1827, %v1826
        %v1842 = vpack.c.bf16 %v1829, %v1828
        %v1843 = vpack.c.bf16 %v1831, %v1830
        %v1844 = vpack.c.bf16 %v1833, %v1832
        %v1845 = vpack.c.bf16 %v1835, %v1834
        %v1846 = vpack.c.bf16 %v1837, %v1836
        %v1847 = vpack.c.bf16 %v1839, %v1838
        %v1848 = vld [vmem:[%s14] sm:$0xf]
        %v1849 = vld [vmem:[%s14 + $0x4] sm:$0xf]
        %v1850 = vld [vmem:[%s14 + $0x8] sm:$0xf]
        %v1851 = vld [vmem:[%s14 + $0xc] sm:$0xf]
        %v1852 = vld [vmem:[%s14 + $0x10] sm:$0xf]
        %v1853 = vld [vmem:[%s14 + $0x14] sm:$0xf]
        %v1854 = vld [vmem:[%s14 + $0x18] sm:$0xf]
        %v1855 = vld [vmem:[%s14 + $0x1c] sm:$0xf]
        %v1856 = vld [vmem:[%s15] sm:$0x1]
        %v1858 = vlaneseq
        %v1859 = vshrl.u32 %v1858, 7
        %v1860 = vsub.s32 0, %v1859
        %v1861 = vrot.slane %v1856, %v1860
        %v1871 = vunpack.c.l.b16 %v1848
        %v1872 = vunpack.c.l.b16 %v1849
        %v1873 = vunpack.c.l.b16 %v1850
        %v1874 = vunpack.c.l.b16 %v1851
        %v1875 = vunpack.c.l.b16 %v1852
        %v1876 = vunpack.c.l.b16 %v1853
        %v1877 = vunpack.c.l.b16 %v1854
        %v1878 = vunpack.c.l.b16 %v1855
        %v1879 = vpack.c.b16 %v1872, %v1871
        %v1880 = vpack.c.b16 %v1874, %v1873
        %v1881 = vpack.c.b16 %v1876, %v1875
        %v1882 = vpack.c.b16 %v1878, %v1877
        %v1888 = vsel %vm842, %v1840, 0
        %v1891 = vsel %vm842, %v1841, 0
        %v1894 = vsel %vm842, %v1842, 0
        %v1897 = vsel %vm842, %v1843, 0
        %v1900 = vsel %vm842, %v1844, 0
        %v1903 = vsel %vm842, %v1845, 0
        %v1906 = vsel %vm842, %v1846, 0
        %v1909 = vsel %vm842, %v1847, 0
        %1911 = vmatprep.subr.bf16.mxu0 0
        %1912 = vmatpush1.bf16.msra.mxu0 0
        %1913 = vmatprep.subr.bf16.mxu0 0
        %1914 = vmatpush1.bf16.msra.mxu0 0
        %1915 = vmatprep.subr.bf16.mxu0 0
        %1916 = vmatpush1.bf16.msra.mxu0 0
        %1917 = vmatprep.subr.bf16.mxu0 0
        %1918 = vmatpush1.bf16.msra.mxu0 0
        %1919 = vmatprep.subr.bf16.mxu0 0
        %1920 = vmatpush1.bf16.msra.mxu0 %v1882
        %1921 = vmatprep.subr.bf16.mxu0 0
        %1922 = vmatpush1.bf16.msra.mxu0 %v1881
        %1923 = vmatprep.subr.bf16.mxu0 0
        %1924 = vmatpush1.bf16.msra.mxu0 %v1880
        %1925 = vmatprep.subr.bf16.mxu0 0
        %1926 = vmatpush1.bf16.msra.mxu0 %v1879
        %1927 = vmatprep.subr.bf16.mxu0 0
        %1928 = vmatpush2.bf16.msra.mxu0 0
        %1929 = vmatprep.subr.bf16.mxu0 0
        %1930 = vmatpush2.bf16.msra.mxu0 0
        %1931 = vmatprep.subr.bf16.mxu0 0
        %1932 = vmatpush2.bf16.msra.mxu0 0
        %1933 = vmatprep.subr.bf16.mxu0 0
        %1934 = vmatpush2.bf16.msra.mxu0 0
        %1935 = vmatprep.subr.bf16.mxu0 0
        %1936 = vmatpush2.bf16.msra.mxu0 0
        %1937 = vmatprep.subr.bf16.mxu0 0
        %1938 = vmatpush2.bf16.msra.mxu0 0
        %1939 = vmatprep.subr.bf16.mxu0 0
        %1940 = vmatpush2.bf16.msra.mxu0 0
        %1941 = vmatprep.subr.bf16.mxu0 0
        %1942 = vmatpush2.bf16.msra.mxu0 0
        %1943 = vmatprep.mubr.bf16.mxu0 0
        %1944 = vmatmul.mubr.bf16.gmra.mxu0 %v1888
        %v1945 = vpop.f32.mrf.mxu0
        %v1946 = vadd.f32 %v1861, %v1945
        %v1947 = vpop.f32.mrf.mxu0
        %v1948 = vpop.f32.mrf.mxu0
        %v1949 = vadd.f32 %v1861, %v1948
        %v1950 = vpop.f32.mrf.mxu0
        %1951 = vmatprep.mubr.bf16.mxu0 0
        %1952 = vmatmul.mubr.bf16.gmra.mxu0 %v1891
        %v1953 = vpop.f32.mrf.mxu0
        %v1954 = vadd.f32 %v1861, %v1953
        %v1955 = vpop.f32.mrf.mxu0
        %v1956 = vpop.f32.mrf.mxu0
        %v1957 = vadd.f32 %v1861, %v1956
        %v1958 = vpop.f32.mrf.mxu0
        %1959 = vmatprep.mubr.bf16.mxu0 0
        %1960 = vmatmul.mubr.bf16.gmra.mxu0 %v1894
        %v1961 = vpop.f32.mrf.mxu0
        %v1962 = vadd.f32 %v1861, %v1961
        %v1963 = vpop.f32.mrf.mxu0
        %v1964 = vpop.f32.mrf.mxu0
        %v1965 = vadd.f32 %v1861, %v1964
        %v1966 = vpop.f32.mrf.mxu0
        %1967 = vmatprep.mubr.bf16.mxu0 0
        %1968 = vmatmul.mubr.bf16.gmra.mxu0 %v1897
        %v1969 = vpop.f32.mrf.mxu0
        %v1970 = vadd.f32 %v1861, %v1969
        %v1971 = vpop.f32.mrf.mxu0
        %v1972 = vpop.f32.mrf.mxu0
        %v1973 = vadd.f32 %v1861, %v1972
        %v1974 = vpop.f32.mrf.mxu0
        %1975 = vmatprep.mubr.bf16.mxu0 0
        %1976 = vmatmul.mubr.bf16.gmra.mxu0 %v1900
        %v1977 = vpop.f32.mrf.mxu0
        %v1978 = vadd.f32 %v1861, %v1977
        %v1979 = vpop.f32.mrf.mxu0
        %v1980 = vpop.f32.mrf.mxu0
        %v1981 = vadd.f32 %v1861, %v1980
        %v1982 = vpop.f32.mrf.mxu0
        %1983 = vmatprep.mubr.bf16.mxu0 0
        %1984 = vmatmul.mubr.bf16.gmra.mxu0 %v1903
        %v1985 = vpop.f32.mrf.mxu0
        %v1986 = vadd.f32 %v1861, %v1985
        %v1987 = vpop.f32.mrf.mxu0
        %v1988 = vpop.f32.mrf.mxu0
        %v1989 = vadd.f32 %v1861, %v1988
        %v1990 = vpop.f32.mrf.mxu0
        %1991 = vmatprep.mubr.bf16.mxu0 0
        %1992 = vmatmul.mubr.bf16.gmra.mxu0 %v1906
        %v1993 = vpop.f32.mrf.mxu0
        %v1994 = vadd.f32 %v1861, %v1993
        %v1995 = vpop.f32.mrf.mxu0
        %v1996 = vpop.f32.mrf.mxu0
        %v1997 = vadd.f32 %v1861, %v1996
        %v1998 = vpop.f32.mrf.mxu0
        %1999 = vmatprep.mubr.bf16.mxu0 0
        %2000 = vmatmul.mubr.bf16.gmra.mxu0 %v1909
        %v2001 = vpop.f32.mrf.mxu0
        %v2002 = vadd.f32 %v1861, %v2001
        %v2003 = vpop.f32.mrf.mxu0
        %v2004 = vpop.f32.mrf.mxu0
        %v2005 = vadd.f32 %v1861, %v2004
        %v2006 = vpop.f32.mrf.mxu0
        %2007 = vdwg.mxu0
        %v2008 = vmax.f32 %v1946, 0.0
        %v2009 = vmax.f32 %v1949, 0.0
        %v2010 = vmax.f32 %v1954, 0.0
        %v2011 = vmax.f32 %v1957, 0.0
        %v2012 = vmax.f32 %v1962, 0.0
        %v2013 = vmax.f32 %v1965, 0.0
        %v2014 = vmax.f32 %v1970, 0.0
        %v2015 = vmax.f32 %v1973, 0.0
        %v2016 = vmax.f32 %v1978, 0.0
        %v2017 = vmax.f32 %v1981, 0.0
        %v2018 = vmax.f32 %v1986, 0.0
        %v2019 = vmax.f32 %v1989, 0.0
        %v2020 = vmax.f32 %v1994, 0.0
        %v2021 = vmax.f32 %v1997, 0.0
        %v2022 = vmax.f32 %v2002, 0.0
        %v2023 = vmax.f32 %v2005, 0.0
        %v2024 = vpack.c.bf16 %v2009, %v2008
        %v2025 = vpack.c.bf16 %v2011, %v2010
        %v2026 = vpack.c.bf16 %v2013, %v2012
        %v2027 = vpack.c.bf16 %v2015, %v2014
        %v2028 = vpack.c.bf16 %v2017, %v2016
        %v2029 = vpack.c.bf16 %v2019, %v2018
        %v2030 = vpack.c.bf16 %v2021, %v2020
        %v2031 = vpack.c.bf16 %v2023, %v2022
        %v2032 = vunpack.c.l.bf16 %v2024
        %v2033 = vunpack.c.h.bf16 %v2024
        %v2034 = vunpack.c.l.bf16 %v2025
        %v2035 = vunpack.c.h.bf16 %v2025
        %v2036 = vunpack.c.l.bf16 %v2026
        %v2037 = vunpack.c.h.bf16 %v2026
        %v2038 = vunpack.c.l.bf16 %v2027
        %v2039 = vunpack.c.h.bf16 %v2027
        %v2040 = vunpack.c.l.bf16 %v2028
        %v2041 = vunpack.c.h.bf16 %v2028
        %v2042 = vunpack.c.l.bf16 %v2029
        %v2043 = vunpack.c.h.bf16 %v2029
        %v2044 = vunpack.c.l.bf16 %v2030
        %v2045 = vunpack.c.h.bf16 %v2030
        %v2046 = vunpack.c.l.bf16 %v2031
        %v2047 = vunpack.c.h.bf16 %v2031
        %v2048 = vld [vmem:[%s16] sm:$0x1]
        %v2050 = vlaneseq
        %v2051 = vshrl.u32 %v2050, 7
        %v2052 = vsub.s32 0, %v2051
        %v2053 = vrot.slane %v2048, %v2052
        %v2055 = vmul.f32 %v2032, %v2053
        %v2056 = vmul.f32 %v2033, %v2053
        %v2057 = vmul.f32 %v2034, %v2053
        %v2058 = vmul.f32 %v2035, %v2053
        %v2059 = vmul.f32 %v2036, %v2053
        %v2060 = vmul.f32 %v2037, %v2053
        %v2061 = vmul.f32 %v2038, %v2053
        %v2062 = vmul.f32 %v2039, %v2053
        %v2063 = vmul.f32 %v2040, %v2053
        %v2064 = vmul.f32 %v2041, %v2053
        %v2065 = vmul.f32 %v2042, %v2053
        %v2066 = vmul.f32 %v2043, %v2053
        %v2067 = vmul.f32 %v2044, %v2053
        %v2068 = vmul.f32 %v2045, %v2053
        %v2069 = vmul.f32 %v2046, %v2053
        %v2070 = vmul.f32 %v2047, %v2053
        %v2071 = vsel %vm842, %v2055, 0.0
        %2072 = vadd.xlane.f32.xlu0 %v2071
        %v2073 = vpop.xlane.xlu0 %2072
        %v2074 = vsel %vm842, %v2056, 0.0
        %2075 = vadd.xlane.f32.xlu0 %v2074
        %v2076 = vpop.xlane.xlu0 %2075
        %v2077 = vsel %vm842, %v2057, 0.0
        %2078 = vadd.xlane.f32.xlu0 %v2077
        %v2079 = vpop.xlane.xlu0 %2078
        %v2080 = vsel %vm842, %v2058, 0.0
        %2081 = vadd.xlane.f32.xlu0 %v2080
        %v2082 = vpop.xlane.xlu0 %2081
        %v2083 = vsel %vm842, %v2059, 0.0
        %2084 = vadd.xlane.f32.xlu0 %v2083
        %v2085 = vpop.xlane.xlu0 %2084
        %v2086 = vsel %vm842, %v2060, 0.0
        %2087 = vadd.xlane.f32.xlu0 %v2086
        %v2088 = vpop.xlane.xlu0 %2087
        %v2089 = vsel %vm842, %v2061, 0.0
        %2090 = vadd.xlane.f32.xlu0 %v2089
        %v2091 = vpop.xlane.xlu0 %2090
        %v2092 = vsel %vm842, %v2062, 0.0
        %2093 = vadd.xlane.f32.xlu0 %v2092
        %v2094 = vpop.xlane.xlu0 %2093
        %v2095 = vsel %vm842, %v2063, 0.0
        %2096 = vadd.xlane.f32.xlu0 %v2095
        %v2097 = vpop.xlane.xlu0 %2096
        %v2098 = vsel %vm842, %v2064, 0.0
        %2099 = vadd.xlane.f32.xlu0 %v2098
        %v2100 = vpop.xlane.xlu0 %2099
        %v2101 = vsel %vm842, %v2065, 0.0
        %2102 = vadd.xlane.f32.xlu0 %v2101
        %v2103 = vpop.xlane.xlu0 %2102
        %v2104 = vsel %vm842, %v2066, 0.0
        %2105 = vadd.xlane.f32.xlu0 %v2104
        %v2106 = vpop.xlane.xlu0 %2105
        %v2107 = vsel %vm842, %v2067, 0.0
        %2108 = vadd.xlane.f32.xlu0 %v2107
        %v2109 = vpop.xlane.xlu0 %2108
        %v2110 = vsel %vm842, %v2068, 0.0
        %2111 = vadd.xlane.f32.xlu0 %v2110
        %v2112 = vpop.xlane.xlu0 %2111
        %v2113 = vsel %vm842, %v2069, 0.0
        %2114 = vadd.xlane.f32.xlu0 %v2113
        %v2115 = vpop.xlane.xlu0 %2114
        %v2116 = vsel %vm842, %v2070, 0.0
        %2117 = vadd.xlane.f32.xlu0 %v2116
        %v2118 = vpop.xlane.xlu0 %2117
        %v2119 = vld [vmem:[#allocation2] sm:$0x1]
        %2121 = vset.pattern.permute.xlu0 0
        %2122 = vperm.xlu0 %2121, %v2119
        %v2123 = vpop.permute.xlu0 %2122
        %v2125 = vlaneseq
        %v2126 = vshrl.u32 %v2125, 7
        %v2127 = vsub.s32 0, %v2126
        %v2128 = vrot.slane %v2123, %v2127
        %v2129 = vadd.f32 %v2073, %v2128
        %v2130 = vadd.f32 %v2076, %v2128
        %v2131 = vadd.f32 %v2079, %v2128
        %v2132 = vadd.f32 %v2082, %v2128
        %v2133 = vadd.f32 %v2085, %v2128
        %v2134 = vadd.f32 %v2088, %v2128
        %v2135 = vadd.f32 %v2091, %v2128
        %v2136 = vadd.f32 %v2094, %v2128
        %v2137 = vadd.f32 %v2097, %v2128
        %v2138 = vadd.f32 %v2100, %v2128
        %v2139 = vadd.f32 %v2103, %v2128
        %v2140 = vadd.f32 %v2106, %v2128
        %v2141 = vadd.f32 %v2109, %v2128
        %v2142 = vadd.f32 %v2112, %v2128
        %v2143 = vadd.f32 %v2115, %v2128
        %v2144 = vadd.f32 %v2118, %v2128
        %v2145 = vtanh.pop %v2129
        %v2146 = vtanh.pop %v2130
        %v2147 = vtanh.pop %v2131
        %v2148 = vtanh.pop %v2132
        %v2149 = vtanh.pop %v2133
        %v2150 = vtanh.pop %v2134
        %v2151 = vtanh.pop %v2135
        %v2152 = vtanh.pop %v2136
        %v2153 = vtanh.pop %v2137
        %v2154 = vtanh.pop %v2138
        %v2155 = vtanh.pop %v2139
        %v2156 = vtanh.pop %v2140
        %v2157 = vtanh.pop %v2141
        %v2158 = vtanh.pop %v2142
        %v2159 = vtanh.pop %v2143
        %v2160 = vtanh.pop %v2144
        %v2177 = vlaneseq
        %v2178 = vand.u32 %v2177, 127
        %v2179 = vlaneseq
        %v2180 = vshrl.u32 %v2179, 7
        %v2181 = vsub.s32 %v2178, %v2180
        %v2182 = vrot.slane %v2145, %v2181
        %v2183 = vadd.s32 %v2178, 4294967288
        %v2184 = vlaneseq
        %v2185 = vshrl.u32 %v2184, 7
        %v2186 = vsub.s32 %v2183, %v2185
        %v2187 = vrot.slane %v2146, %v2186
        %vm2188 = vcmask 130112
        %v2189 = vsel %vm2188, %v2187, %v2182
        %v2190 = vadd.s32 %v2178, 4294967280
        %v2191 = vlaneseq
        %v2192 = vshrl.u32 %v2191, 7
        %v2193 = vsub.s32 %v2190, %v2192
        %v2194 = vrot.slane %v2147, %v2193
        %vm2195 = vcmask 195712
        %v2196 = vsel %vm2195, %v2194, %v2189
        %v2197 = vadd.s32 %v2178, 4294967272
        %v2198 = vlaneseq
        %v2199 = vshrl.u32 %v2198, 7
        %v2200 = vsub.s32 %v2197, %v2199
        %v2201 = vrot.slane %v2148, %v2200
        %vm2202 = vcmask 261312
        %v2203 = vsel %vm2202, %v2201, %v2196
        %v2204 = vadd.s32 %v2178, 4294967264
        %v2205 = vlaneseq
        %v2206 = vshrl.u32 %v2205, 7
        %v2207 = vsub.s32 %v2204, %v2206
        %v2208 = vrot.slane %v2149, %v2207
        %vm2209 = vcmask 326912
        %v2210 = vsel %vm2209, %v2208, %v2203
        %v2211 = vadd.s32 %v2178, 4294967256
        %v2212 = vlaneseq
        %v2213 = vshrl.u32 %v2212, 7
        %v2214 = vsub.s32 %v2211, %v2213
        %v2215 = vrot.slane %v2150, %v2214
        %vm2216 = vcmask 392512
        %v2217 = vsel %vm2216, %v2215, %v2210
        %v2218 = vadd.s32 %v2178, 4294967248
        %v2219 = vlaneseq
        %v2220 = vshrl.u32 %v2219, 7
        %v2221 = vsub.s32 %v2218, %v2220
        %v2222 = vrot.slane %v2151, %v2221
        %vm2223 = vcmask 458112
        %v2224 = vsel %vm2223, %v2222, %v2217
        %v2225 = vadd.s32 %v2178, 4294967240
        %v2226 = vlaneseq
        %v2227 = vshrl.u32 %v2226, 7
        %v2228 = vsub.s32 %v2225, %v2227
        %v2229 = vrot.slane %v2152, %v2228
        %vm2230 = vcmask 523712
        %v2231 = vsel %vm2230, %v2229, %v2224
        %v2232 = vadd.s32 %v2178, 4294967232
        %v2233 = vlaneseq
        %v2234 = vshrl.u32 %v2233, 7
        %v2235 = vsub.s32 %v2232, %v2234
        %v2236 = vrot.slane %v2153, %v2235
        %vm2237 = vcmask 589312
        %v2238 = vsel %vm2237, %v2236, %v2231
        %v2239 = vadd.s32 %v2178, 4294967224
        %v2240 = vlaneseq
        %v2241 = vshrl.u32 %v2240, 7
        %v2242 = vsub.s32 %v2239, %v2241
        %v2243 = vrot.slane %v2154, %v2242
        %vm2244 = vcmask 654912
        %v2245 = vsel %vm2244, %v2243, %v2238
        %v2246 = vadd.s32 %v2178, 4294967216
        %v2247 = vlaneseq
        %v2248 = vshrl.u32 %v2247, 7
        %v2249 = vsub.s32 %v2246, %v2248
        %v2250 = vrot.slane %v2155, %v2249
        %vm2251 = vcmask 720512
        %v2252 = vsel %vm2251, %v2250, %v2245
        %v2253 = vadd.s32 %v2178, 4294967208
        %v2254 = vlaneseq
        %v2255 = vshrl.u32 %v2254, 7
        %v2256 = vsub.s32 %v2253, %v2255
        %v2257 = vrot.slane %v2156, %v2256
        %vm2258 = vcmask 786112
        %v2259 = vsel %vm2258, %v2257, %v2252
        %v2260 = vadd.s32 %v2178, 4294967200
        %v2261 = vlaneseq
        %v2262 = vshrl.u32 %v2261, 7
        %v2263 = vsub.s32 %v2260, %v2262
        %v2264 = vrot.slane %v2157, %v2263
        %vm2265 = vcmask 851712
        %v2266 = vsel %vm2265, %v2264, %v2259
        %v2267 = vadd.s32 %v2178, 4294967192
        %v2268 = vlaneseq
        %v2269 = vshrl.u32 %v2268, 7
        %v2270 = vsub.s32 %v2267, %v2269
        %v2271 = vrot.slane %v2158, %v2270
        %vm2272 = vcmask 917312
        %v2273 = vsel %vm2272, %v2271, %v2266
        %v2274 = vadd.s32 %v2178, 4294967184
        %v2275 = vlaneseq
        %v2276 = vshrl.u32 %v2275, 7
        %v2277 = vsub.s32 %v2274, %v2276
        %v2278 = vrot.slane %v2159, %v2277
        %vm2279 = vcmask 982912
        %v2280 = vsel %vm2279, %v2278, %v2273
        %v2281 = vadd.s32 %v2178, 4294967176
        %v2282 = vlaneseq
        %v2283 = vshrl.u32 %v2282, 7
        %v2284 = vsub.s32 %v2281, %v2283
        %v2285 = vrot.slane %v2160, %v2284
        %vm2286 = vcmask 1048512
        %v2287 = vsel %vm2286, %v2285, %v2280
        %2289 = vst [vmem:[%s570] sm:$0x1] %v2287
        %s2290 = sand.u32 %s425, 1
        %s2291 = scalar_lea.sflag [#allocation4], %s2290
        %s2292 = sand.u32 %s425, 1
        %s2293 = scalar_lea.vmem [#allocation3], %s2292
        // Predicated region
        $region93: #{tpu_custom_call.1} parent=91 // pred_check
          %p2294 = pneg %p435
        $region94: #{tpu_custom_call.1} parent=91 // pred_check_branch
          %2296 = sbr.rel (%p2294) target = $region96
        $region95: #{tpu_custom_call.1} parent=91 // pred_region
          %s2298 = ssub.s32 16, 16
          %2299 = vsyncadd %s2291, %s2298
          %s2300 = smul.addr %s34, 16
          %s2301 = scalar_lea.hbm %s18, %s2300
          %s2303 = sshll.u32 %s2293, 4
          %s2304 = int_to_ptr.vmem [resolvable:$true] %s2303
          %2306 = dma.vmem_to_hbm [thread:$0]  %s2304, 16, %s2301, %s2291
        $region96: #{tpu_custom_call.1} parent=91 // pred_fallthru
          _
      $region92: #{tpu_custom_call.1} parent=5 // pred_fallthru
        _
      %p2307 = scmp.le.s32.totalorder 2, %s29
      // Predicated region
      $region97: #{tpu_custom_call.1} parent=5 // pred_check
        %p2308 = pneg %p2307
      $region98: #{tpu_custom_call.1} parent=5 // pred_check_branch
        %2310 = sbr.rel (%p2308) target = $region100
      $region99: #{tpu_custom_call.1} parent=5 // pred_region
        %s2311 = ssub.s32 %s29, 2
        // Predicated region
        $region101: #{tpu_custom_call.1} parent=99 // pred_check
          %p2312 = pneg %p441
        $region102: #{tpu_custom_call.1} parent=99 // pred_check_branch
          %2314 = sbr.rel (%p2312) target = $region104
        $region103: #{tpu_custom_call.1} parent=99 // pred_region
          %s2315 = sand.u32 %s426, 1
          %s2316 = scalar_lea.sflag [#allocation4], %s2315
          %s2317 = sand.u32 %s426, 1
          %s2318 = scalar_lea.vmem [#allocation3], %s2317
          %2319 = dma.done %s2316, 16
        $region104: #{tpu_custom_call.1} parent=99 // pred_fallthru
          _
      $region100: #{tpu_custom_call.1} parent=5 // pred_fallthru
        _
    $region6: #{tpu_custom_call.1} parent=1 // loop_footer
      %s33 = sadd.s32 1, %s29
    $region7: #{tpu_custom_call.1} parent=1 // loop_footer_branch
      %28 = sbr.rel target = $region3
    $region8: #{tpu_custom_call.1} parent=1 // loop_exit
      _
    %2320 = vsyncpa [#allocation4], 1
    %s2321 = scalar_lea.sflag [#allocation4], 1
    %2322 = vsyncpa %s2321, 1

</llo_original>
